<compile_context>
chip_gen: v7x
topology: tpu7x:2x2x1
jax: 0.10.0
libtpu: 0.0.40
codegen_flags: <defaults>
</compile_context>

<pallas_src>
import functools

import jax
import jax.numpy as jnp
from jax.experimental import pallas as pl
from jax.experimental.pallas import tpu as pltpu

_BN_EPS = 1e-5
_LANE = 128
_SUBLANE = 16      # bf16 packs 16 sublanes per vreg; keep row tiles 16-aligned


def _round_up(n, m):
    return ((n + m - 1) // m) * m


def _tpu_vmem_capacity():
    try:
        return int(pltpu.get_tpu_info().vmem_capacity_bytes)
    except Exception:
        return 64 * 2 ** 20          # conservative (v7x) fallback


_VMEM_CAP = _tpu_vmem_capacity()


def _vmem_limit(bytes_needed):
    # 2x headroom over the double-buffered footprint, capped at ~85% of the
    # per-generation physical VMEM (~108 MiB on v5e/v6e, ~54 MiB on v7x).
    cap = int(0.85 * _VMEM_CAP)
    return int(min(cap, max(16 * 2 ** 20, 2 * bytes_needed)))


def _pick_tile(n, layer_dims, tile_rows):
    """Row-tile size: >=2 grid tiles when the batch allows (v7x megacore),
    sublane-aligned, and sized against the per-generation VMEM budget."""
    tile = min(_round_up(tile_rows, _SUBLANE),
               max(_SUBLANE, _round_up((n + 1) // 2, _SUBLANE)))
    budget = int(0.45 * _VMEM_CAP)
    for din, dout in layer_dims:
        # grid-invariant operands (weights, bias, scale/shift, stats tile)
        const = 2 * (din * dout * 2 + 8 * dout * 4 + dout * 4) + 2 * din * 4
        # double-buffered bf16 activation tiles + f32 working set per row
        per_row = 2 * (din + dout) * 2 + (din + dout) * 4
        fit = (budget - const) // max(per_row, 1)
        fit = max(_SUBLANE, (fit // _SUBLANE) * _SUBLANE)
        tile = min(tile, fit)
    return tile


# --------------------------------------------------------------------------
# Kernels
# --------------------------------------------------------------------------
def _linear_stats_kernel(has_pre, n_valid, tile_rows, *refs):
    """(optional folded-BN + ReLU of previous layer) -> Linear -> partial stats.

    refs = [x, (scale, shift)?, w, y_out, stats_out]
      y_out     (tile_rows, D) bf16: this layer's pre-norm activations
      stats_out (8, D) f32: row 0 = column sum, row 1 = column sum of squares
    """
    if has_pre:
        x_ref, scale_ref, shift_ref, w_ref, y_ref, stats_ref = refs
    else:
        x_ref, w_ref, y_ref, stats_ref = refs

    if has_pre:
        # Folded training-mode BatchNorm (scale/shift precomputed, f32) + ReLU.
        h = jnp.maximum(x_ref[...].astype(jnp.float32) * scale_ref[...]
                        + shift_ref[...], 0.0)
        # Zero batch-padding rows so they do not pollute this layer's stats.
        row = (jax.lax.broadcasted_iota(jnp.int32, h.shape, 0)
               + pl.program_id(0) * tile_rows)
        h = jnp.where(row < n_valid, h, 0.0)
        a = h.astype(jnp.bfloat16)
    else:
        a = x_ref[...]            # already bf16; padding rows are exact zeros

    # Native bf16 x bf16 MXU matmul, f32 accumulation.
    y = jnp.dot(a, w_ref[...], preferred_element_type=jnp.float32)

    # Single-traversal partial BN statistics on the f32 result (before the
    # bf16 store).  Rows 2..7 of the stats tile are never read.
    # TODO(synk): E[y^2]-mean^2 can lose precision if |mean| >> std; a
    # Welford-style centered merge would be more robust.
    stats_ref[0:1, :] = jnp.sum(y, axis=0, keepdims=True)
    stats_ref[1:2, :] = jnp.sum(y * y, axis=0, keepdims=True)

    y_ref[...] = y.astype(jnp.bfloat16)


def _head_kernel(var_lane_start, x_ref, scale_ref, shift_ref, w_ref, b_ref,
                 out_ref):
    """Folded-BN + ReLU -> fused [enc_mu | enc_var] matmul -> exp(clamp) on var."""
    h = jnp.maximum(x_ref[...].astype(jnp.float32) * scale_ref[...]
                    + shift_ref[...], 0.0)
    head = jnp.dot(h.astype(jnp.bfloat16), w_ref[...],
                   preferred_element_type=jnp.float32) + b_ref[...]
    # Lanes [0, var_lane_start) hold mu; lanes >= var_lane_start hold logvar.
    # Both blocks are 128-lane aligned; lane padding is sliced off outside.
    col = jax.lax.broadcasted_iota(jnp.int32, head.shape, 1)
    out_ref[...] = jnp.where(col >= var_lane_start,
                             jnp.exp(jnp.clip(head, -15.0, 15.0)), head)


# --------------------------------------------------------------------------
# Per-layer pallas_call wrappers
# --------------------------------------------------------------------------
def _linear_with_stats(x, w_bf16, scale, shift, *, tile_rows, n_valid):
    n_pad, din = x.shape
    dout = w_bf16.shape[1]
    n_tiles = n_pad // tile_rows
    has_pre = scale is not None

    in_specs = [pl.BlockSpec((tile_rows, din), lambda i: (i, 0))]
    operands = [x]
    if has_pre:
        in_specs += [pl.BlockSpec((1, din), lambda i: (0, 0)),
                     pl.BlockSpec((1, din), lambda i: (0, 0))]
        operands += [scale, shift]
    in_specs.append(pl.BlockSpec((din, dout), lambda i: (0, 0)))
    operands.append(w_bf16)

    out_specs = (pl.BlockSpec((tile_rows, dout), lambda i: (i, 0)),
                 pl.BlockSpec((8, dout), lambda i: (i, 0)))
    out_shape = (jax.ShapeDtypeStruct((n_pad, dout), jnp.bfloat16),
                 jax.ShapeDtypeStruct((n_tiles * 8, dout), jnp.float32))

    buf_bytes = (tile_rows * din * 2 + tile_rows * dout * 2 + 8 * dout * 4
                 + din * dout * 2 + (2 * din * 4 if has_pre else 0))
    cost = pl.CostEstimate(
        flops=2 * n_pad * din * dout, transcendentals=0,
        bytes_accessed=(n_pad * din * 2 + din * dout * 2
                        + n_pad * dout * 2 + n_tiles * 8 * dout * 4))

    y, stats = pl.pallas_call(
        functools.partial(_linear_stats_kernel, has_pre, n_valid, tile_rows),
        grid=(n_tiles,),
        in_specs=in_specs,
        out_specs=out_specs,
        out_shape=out_shape,
        compiler_params=pltpu.CompilerParams(
            dimension_semantics=("parallel",),
            vmem_limit_bytes=_vmem_limit(2 * buf_bytes)),
        cost_estimate=cost,
    )(*operands)

    stats = stats.reshape(n_tiles, 8, dout)
    col_sum = jnp.sum(stats[:, 0, :], axis=0, keepdims=True)
    col_sq = jnp.sum(stats[:, 1, :], axis=0, keepdims=True)
    return y, col_sum, col_sq


def _head(y, scale, shift, w_head, b_head, *, tile_rows, var_lane_start):
    n_pad, din = y.shape
    dout_p = w_head.shape[1]
    n_tiles = n_pad // tile_rows

    buf_bytes = (tile_rows * din * 2 + tile_rows * dout_p * 4
                 + din * dout_p * 2 + 2 * din * 4 + dout_p * 4)
    cost = pl.CostEstimate(
        flops=2 * n_pad * din * dout_p,
        transcendentals=n_pad * (dout_p - var_lane_start),
        bytes_accessed=(n_pad * din * 2 + din * dout_p * 2 + n_pad * dout_p * 4))

    return pl.pallas_call(
        functools.partial(_head_kernel, var_lane_start),
        grid=(n_tiles,),
        in_specs=[pl.BlockSpec((tile_rows, din), lambda i: (i, 0)),
                  pl.BlockSpec((1, din), lambda i: (0, 0)),
                  pl.BlockSpec((1, din), lambda i: (0, 0)),
                  pl.BlockSpec((din, dout_p), lambda i: (0, 0)),
                  pl.BlockSpec((1, dout_p), lambda i: (0, 0))],
        out_specs=pl.BlockSpec((tile_rows, dout_p), lambda i: (i, 0)),
        out_shape=jax.ShapeDtypeStruct((n_pad, dout_p), jnp.float32),
        compiler_params=pltpu.CompilerParams(
            dimension_semantics=("parallel",),
            vmem_limit_bytes=_vmem_limit(2 * buf_bytes)),
        cost_estimate=cost,
    )(y, scale, shift, w_head, b_head)


def _bn_scale_shift(col_sum, col_sq, gamma, beta, n_valid):
    # O(D) work — done in plain JAX between the batch-tiled kernels.
    mean = col_sum / n_valid
    var = jnp.maximum(col_sq / n_valid - mean * mean, 0.0)   # biased variance
    scale = gamma * jax.lax.rsqrt(var + _BN_EPS)
    shift = beta - mean * scale
    return scale, shift


# --------------------------------------------------------------------------
# Forward
# --------------------------------------------------------------------------
def dense_encoder_forward(x, packed, *, output_dim, tile_rows=512):
    """mu, var = DenseEncoder(x) with training-mode BatchNorm batch statistics."""
    # TODO(synk): BatchNorm1d running_mean/running_var momentum updates are a
    # training-time buffer side-effect not returned by forward; not materialized.
    n = x.shape[0]
    layer_dims = [tuple(w.shape) for w, _g, _b in packed["hidden"]]
    layer_dims.append(tuple(packed["w_head"].shape))
    tile = _pick_tile(n, layer_dims, tile_rows)
    n_pad = _round_up(n, tile)
    h = jnp.pad(x.astype(jnp.bfloat16), ((0, n_pad - n), (0, 0)))

    scale = shift = None
    for w_bf16, gamma, beta in packed["hidden"]:
        h, col_sum, col_sq = _linear_with_stats(
            h, w_bf16, scale, shift, tile_rows=tile, n_valid=n)
        scale, shift = _bn_scale_shift(col_sum, col_sq, gamma, beta, n)

    half_p = _round_up(output_dim, _LANE)
    out = _head(h, scale, shift, packed["w_head"], packed["b_head"],
                tile_rows=tile, var_lane_start=half_p)
    mu = out[:n, :output_dim]
    var = out[:n, half_p:half_p + output_dim]
    return mu, var


# --------------------------------------------------------------------------
# Parameters
# --------------------------------------------------------------------------
def init_params(key, input_dim, hidden_dims, output_dim):
    """Raw f32 parameters mirroring PyTorch Linear / BatchNorm1d default init."""
    hidden = []
    dims = [input_dim] + list(hidden_dims)
    for i in range(len(hidden_dims)):
        fan_in, fan_out = dims[i], dims[i + 1]
        key, kw, kb = jax.random.split(key, 3)
        bound = 1.0 / float(fan_in) ** 0.5
        w = jax.random.uniform(kw, (fan_in, fan_out), jnp.float32, -bound, bound)
        b = jax.random.uniform(kb, (fan_out,), jnp.float32, -bound, bound)
        hidden.append((w, b, jnp.ones((fan_out,), jnp.float32),
                       jnp.zeros((fan_out,), jnp.float32)))
    last = hidden_dims[-1]
    heads = []
    for _ in range(2):   # enc_mu, enc_var
        key, kw, kb = jax.random.split(key, 3)
        bound = 1.0 / float(last) ** 0.5
        w = jax.random.uniform(kw, (last, output_dim), jnp.float32, -bound, bound)
        b = jax.random.uniform(kb, (output_dim,), jnp.float32, -bound, bound)
        heads.append((w, b))
    return {"hidden": hidden, "mu": heads[0], "var": heads[1]}


def pack_params(raw, input_dim, hidden_dims, output_dim):
    """Kernel-side params: lane-padded, mu/var heads fused, weights in bf16.

    Hidden-layer Linear biases are intentionally dropped: with training-mode
    BatchNorm they are exactly cancelled by the mean subtraction.
    """
    hidden = []
    din = input_dim                       # layer-1 contraction dim stays unpadded
    for (w, _b, gamma, beta), dout in zip(raw["hidden"], hidden_dims):
        dout_p = _round_up(dout, _LANE)
        w_p = jnp.zeros((din, dout_p), jnp.float32).at[:w.shape[0], :dout].set(w)
        g_p = jnp.zeros((1, dout_p), jnp.float32).at[0, :dout].set(gamma)
        b_p = jnp.zeros((1, dout_p), jnp.float32).at[0, :dout].set(beta)
        hidden.append((w_p.astype(jnp.bfloat16), g_p, b_p))
        din = dout_p                      # next layer consumes padded features

    (w_mu, b_mu), (w_var, b_var) = raw["mu"], raw["var"]
    half_p = _round_up(output_dim, _LANE)          # mu block = lanes [0, half_p)
    out_p = 2 * half_p                             # var block starts at half_p
    w_head = jnp.zeros((din, out_p), jnp.float32)
    w_head = w_head.at[:w_mu.shape[0], :output_dim].set(w_mu)
    w_head = w_head.at[:w_var.shape[0], half_p:half_p + output_dim].set(w_var)
    b_head = jnp.zeros((1, out_p), jnp.float32)
    b_head = b_head.at[0, :output_dim].set(b_mu)
    b_head = b_head.at[0, half_p:half_p + output_dim].set(b_var)
    return {"hidden": hidden,
            "w_head": w_head.astype(jnp.bfloat16),
            "b_head": b_head}


def reference_forward(x, raw, output_dim):
    """Pure-JAX reference with the exact PyTorch forward semantics.

    Weights and layer-boundary activations are rounded through bfloat16 to
    mirror the kernel's storage precision (all math stays f32).  Hidden-layer
    Linear biases ARE applied here — under training-mode BatchNorm they cancel
    exactly, which is why the kernel can drop them."""
    rnd = lambda a: a.astype(jnp.bfloat16).astype(jnp.float32)
    h = rnd(x)
    for w, b, gamma, beta in raw["hidden"]:
        y = h @ rnd(w) + b
        mean = jnp.mean(y, axis=0, keepdims=True)
        var = jnp.mean((y - mean) ** 2, axis=0, keepdims=True)
        h = rnd(jnp.maximum((y - mean) / jnp.sqrt(var + _BN_EPS) * gamma + beta,
                            0.0))
    (w_mu, b_mu), (w_var, b_var) = raw["mu"], raw["var"]
    mu = h @ rnd(w_mu) + b_mu
    var = jnp.exp(jnp.clip(h @ rnd(w_var) + b_var, -15.0, 15.0))
    return mu, var


if __name__ == "__main__":
    # Small shapes consistent with DenseEncoder(input_dim, hidden_dims, output_dim).
    batch, input_dim, hidden_dims, output_dim = 20, 32, [64, 32], 16

    key = jax.random.PRNGKey(0)
    key, kx = jax.random.split(key)
    x = jax.random.normal(kx, (batch, input_dim), jnp.float32)

    raw = init_params(key, input_dim, hidden_dims, output_dim)
    packed = pack_params(raw, input_dim, hidden_dims, output_dim)

    # tile_rows=8 keeps the tiny test multi-tile (exercises batch padding,
    # per-tile row masking, and the cross-tile stats reduce).
    fwd = jax.jit(functools.partial(dense_encoder_forward,
                                    output_dim=output_dim, tile_rows=8))
    mu, var = fwd(x, packed)
    jax.block_until_ready((mu, var))

    mu_ref, var_ref = reference_forward(x, raw, output_dim)
    assert mu.shape == (batch, output_dim) and var.shape == (batch, output_dim)
    # bf16 activation storage + native bf16 MXU inputs => looser-than-f32
    # tolerance; structural bugs would still show as O(1) errors.
    assert jnp.allclose(mu, mu_ref, atol=5e-2, rtol=5e-2), \
        float(jnp.max(jnp.abs(mu - mu_ref)))
    assert jnp.allclose(var, var_ref, atol=5e-2, rtol=5e-2), \
        float(jnp.max(jnp.abs(var - var_ref)))
    assert bool(jnp.all(var > 0))
    print("KERNEL_OK")
</pallas_src>

<mosaic_0001>
module attributes {stable_mosaic.version = 11 : i64} {
  func.func @_linear_stats_kernel(%arg0: i32, %arg1: memref<16x32xbf16, #tpu.memory_space<vmem>>, %arg2: memref<32x128xbf16, #tpu.memory_space<vmem>>, %arg3: memref<16x128xbf16, #tpu.memory_space<vmem>>, %arg4: memref<8x128xf32, #tpu.memory_space<vmem>>) attributes {dimension_semantics = [#tpu.dimension_semantics<parallel>], iteration_bounds = array<i64: 2>, scalar_prefetch = 0 : i64, scratch_operands = 0 : i64, tpu.core_type = #tpu.core_type<tc>, window_params = [{transform_indices = @transform_0, window_bounds = array<i64: 16, 32>}, {pipeline_mode = #tpu.pipeline_mode<synchronous>, transform_indices = @transform_1, window_bounds = array<i64: 32, 128>}, {transform_indices = @transform_2, window_bounds = array<i64: 16, 128>}, {transform_indices = @transform_3, window_bounds = array<i64: 8, 128>}]} {
    %c0 = arith.constant 0 : index
    %c0_0 = arith.constant 0 : index
    %0 = vector.load %arg1[%c0, %c0_0] : memref<16x32xbf16, #tpu.memory_space<vmem>>, vector<16x32xbf16>
    %c0_1 = arith.constant 0 : index
    %c0_2 = arith.constant 0 : index
    %1 = vector.load %arg2[%c0_1, %c0_2] : memref<32x128xbf16, #tpu.memory_space<vmem>>, vector<32x128xbf16>
    %cst = arith.constant dense<0.000000e+00> : vector<16x128xf32>
    %2 = tpu.matmul %0, %1, %cst {dimension_numbers = #tpu.dot_dimension_numbers<[1], [0], [0], [1], [0, 0, 1, 1], [], []>} : vector<16x32xbf16>, vector<32x128xbf16>, vector<16x128xf32> -> vector<16x128xf32>
    %cst_3 = arith.constant dense<0.000000e+00> : vector<128xf32>
    %3 = vector.multi_reduction <add>, %2, %cst_3 [0] : vector<16x128xf32> to vector<128xf32>
    %4 = vector.shape_cast %3 : vector<128xf32> to vector<1x128xf32>
    %c0_4 = arith.constant 0 : index
    %c0_5 = arith.constant 0 : index
    %5 = vector.load %arg4[%c0_4, %c0_5] : memref<8x128xf32, #tpu.memory_space<vmem>>, vector<1x128xf32>
    tpu.vector_store %arg4[%c0_4, %c0_5], %4 {strides = array<i32>} : memref<8x128xf32, #tpu.memory_space<vmem>>, vector<1x128xf32>,
    %6 = arith.mulf %2, %2 : vector<16x128xf32>
    %cst_6 = arith.constant dense<0.000000e+00> : vector<128xf32>
    %7 = vector.multi_reduction <add>, %6, %cst_6 [0] : vector<16x128xf32> to vector<128xf32>
    %8 = vector.shape_cast %7 : vector<128xf32> to vector<1x128xf32>
    %c1 = arith.constant 1 : index
    %c0_7 = arith.constant 0 : index
    %9 = vector.load %arg4[%c1, %c0_7] : memref<8x128xf32, #tpu.memory_space<vmem>>, vector<1x128xf32>
    tpu.vector_store %arg4[%c1, %c0_7], %8 {strides = array<i32>} : memref<8x128xf32, #tpu.memory_space<vmem>>, vector<1x128xf32>,
    %10 = arith.truncf %2 : vector<16x128xf32> to vector<16x128xbf16>
    %c0_8 = arith.constant 0 : index
    %c0_9 = arith.constant 0 : index
    %11 = vector.load %arg3[%c0_8, %c0_9] : memref<16x128xbf16, #tpu.memory_space<vmem>>, vector<16x128xbf16>
    tpu.vector_store %arg3[%c0_8, %c0_9], %10 {strides = array<i32>} : memref<16x128xbf16, #tpu.memory_space<vmem>>, vector<16x128xbf16>,
    return
  }
  func.func @transform_0(%arg0: i32) -> (i32, i32) {
    %c0_i32 = arith.constant 0 : i32
    %c0_i32_0 = arith.constant 0 : i32
    return %arg0, %c0_i32 : i32, i32
  }
  func.func @transform_1(%arg0: i32) -> (i32, i32) {
    %c0_i32 = arith.constant 0 : i32
    %c0_i32_0 = arith.constant 0 : i32
    %c0_i32_1 = arith.constant 0 : i32
    return %c0_i32, %c0_i32_0 : i32, i32
  }
  func.func @transform_2(%arg0: i32) -> (i32, i32) {
    %c0_i32 = arith.constant 0 : i32
    %c0_i32_0 = arith.constant 0 : i32
    return %arg0, %c0_i32 : i32, i32
  }
  func.func @transform_3(%arg0: i32) -> (i32, i32) {
    %c0_i32 = arith.constant 0 : i32
    %c0_i32_0 = arith.constant 0 : i32
    return %arg0, %c0_i32 : i32, i32
  }
}

module attributes {stable_mosaic.version = 11 : i64} {
  func.func @_head_kernel(%arg0: i32, %arg1: memref<16x128xbf16, #tpu.memory_space<vmem>>, %arg2: memref<1x128xf32, #tpu.memory_space<vmem>>, %arg3: memref<1x128xf32, #tpu.memory_space<vmem>>, %arg4: memref<128x256xbf16, #tpu.memory_space<vmem>>, %arg5: memref<1x256xf32, #tpu.memory_space<vmem>>, %arg6: memref<16x256xf32, #tpu.memory_space<vmem>>) attributes {dimension_semantics = [#tpu.dimension_semantics<parallel>], iteration_bounds = array<i64: 2>, scalar_prefetch = 0 : i64, scratch_operands = 0 : i64, tpu.core_type = #tpu.core_type<tc>, window_params = [{transform_indices = @transform_0, window_bounds = array<i64: 16, 128>}, {pipeline_mode = #tpu.pipeline_mode<synchronous>, transform_indices = @transform_1, window_bounds = array<i64: 1, 128>}, {pipeline_mode = #tpu.pipeline_mode<synchronous>, transform_indices = @transform_2, window_bounds = array<i64: 1, 128>}, {pipeline_mode = #tpu.pipeline_mode<synchronous>, transform_indices = @transform_3, window_bounds = array<i64: 128, 256>}, {pipeline_mode = #tpu.pipeline_mode<synchronous>, transform_indices = @transform_4, window_bounds = array<i64: 1, 256>}, {transform_indices = @transform_5, window_bounds = array<i64: 16, 256>}]} {
    %c0 = arith.constant 0 : index
    %c0_0 = arith.constant 0 : index
    %0 = vector.load %arg1[%c0, %c0_0] : memref<16x128xbf16, #tpu.memory_space<vmem>>, vector<16x128xbf16>
    %1 = arith.extf %0 : vector<16x128xbf16> to vector<16x128xf32>
    %c0_1 = arith.constant 0 : index
    %c0_2 = arith.constant 0 : index
    %2 = vector.load %arg2[%c0_1, %c0_2] : memref<1x128xf32, #tpu.memory_space<vmem>>, vector<1x128xf32>
    %3 = vector.broadcast %2 : vector<1x128xf32> to vector<16x128xf32>
    %4 = arith.mulf %1, %3 : vector<16x128xf32>
    %c0_3 = arith.constant 0 : index
    %c0_4 = arith.constant 0 : index
    %5 = vector.load %arg3[%c0_3, %c0_4] : memref<1x128xf32, #tpu.memory_space<vmem>>, vector<1x128xf32>
    %6 = vector.broadcast %5 : vector<1x128xf32> to vector<16x128xf32>
    %7 = arith.addf %4, %6 : vector<16x128xf32>
    %cst = arith.constant 0.000000e+00 : f32
    %8 = vector.broadcast %cst : f32 to vector<16x128xf32>
    %9 = arith.maximumf %7, %8 : vector<16x128xf32>
    %10 = arith.truncf %9 : vector<16x128xf32> to vector<16x128xbf16>
    %c0_5 = arith.constant 0 : index
    %c0_6 = arith.constant 0 : index
    %11 = vector.load %arg4[%c0_5, %c0_6] : memref<128x256xbf16, #tpu.memory_space<vmem>>, vector<128x256xbf16>
    %cst_7 = arith.constant dense<0.000000e+00> : vector<16x256xf32>
    %12 = tpu.matmul %10, %11, %cst_7 {dimension_numbers = #tpu.dot_dimension_numbers<[1], [0], [0], [1], [0, 0, 1, 1], [], []>} : vector<16x128xbf16>, vector<128x256xbf16>, vector<16x256xf32> -> vector<16x256xf32>
    %c0_8 = arith.constant 0 : index
    %c0_9 = arith.constant 0 : index
    %13 = vector.load %arg5[%c0_8, %c0_9] : memref<1x256xf32, #tpu.memory_space<vmem>>, vector<1x256xf32>
    %14 = vector.broadcast %13 : vector<1x256xf32> to vector<16x256xf32>
    %15 = arith.addf %12, %14 : vector<16x256xf32>
    %16 = tpu.iota {dimensions = array<i32: 1>} : vector<16x256xi32>
    %c128_i32 = arith.constant 128 : i32
    %17 = vector.broadcast %c128_i32 : i32 to vector<16x256xi32>
    %18 = arith.cmpi sge, %16, %17 : vector<16x256xi32>
    %cst_10 = arith.constant -1.500000e+01 : f32
    %cst_11 = arith.constant 1.500000e+01 : f32
    %19 = vector.broadcast %cst_10 : f32 to vector<16x256xf32>
    %20 = arith.maximumf %19, %15 : vector<16x256xf32>
    %21 = vector.broadcast %cst_11 : f32 to vector<16x256xf32>
    %22 = arith.minimumf %21, %20 : vector<16x256xf32>
    %23 = math.exp %22 : vector<16x256xf32>
    %24 = arith.select %18, %23, %15 : vector<16x256xi1>, vector<16x256xf32>
    %c0_12 = arith.constant 0 : index
    %c0_13 = arith.constant 0 : index
    %25 = vector.load %arg6[%c0_12, %c0_13] : memref<16x256xf32, #tpu.memory_space<vmem>>, vector<16x256xf32>
    tpu.vector_store %arg6[%c0_12, %c0_13], %24 {strides = array<i32>} : memref<16x256xf32, #tpu.memory_space<vmem>>, vector<16x256xf32>,
    return
  }
  func.func @transform_0(%arg0: i32) -> (i32, i32) {
    %c0_i32 = arith.constant 0 : i32
    %c0_i32_0 = arith.constant 0 : i32
    return %arg0, %c0_i32 : i32, i32
  }
  func.func @transform_1(%arg0: i32) -> (i32, i32) {
    %c0_i32 = arith.constant 0 : i32
    %c0_i32_0 = arith.constant 0 : i32
    %c0_i32_1 = arith.constant 0 : i32
    return %c0_i32, %c0_i32_0 : i32, i32
  }
  func.func @transform_2(%arg0: i32) -> (i32, i32) {
    %c0_i32 = arith.constant 0 : i32
    %c0_i32_0 = arith.constant 0 : i32
    %c0_i32_1 = arith.constant 0 : i32
    return %c0_i32, %c0_i32_0 : i32, i32
  }
  func.func @transform_3(%arg0: i32) -> (i32, i32) {
    %c0_i32 = arith.constant 0 : i32
    %c0_i32_0 = arith.constant 0 : i32
    %c0_i32_1 = arith.constant 0 : i32
    return %c0_i32, %c0_i32_0 : i32, i32
  }
  func.func @transform_4(%arg0: i32) -> (i32, i32) {
    %c0_i32 = arith.constant 0 : i32
    %c0_i32_0 = arith.constant 0 : i32
    %c0_i32_1 = arith.constant 0 : i32
    return %c0_i32, %c0_i32_0 : i32, i32
  }
  func.func @transform_5(%arg0: i32) -> (i32, i32) {
    %c0_i32 = arith.constant 0 : i32
    %c0_i32_0 = arith.constant 0 : i32
    return %arg0, %c0_i32 : i32, i32
  }
}

module attributes {stable_mosaic.version = 11 : i64} {
  func.func @_linear_stats_kernel(%arg0: i32, %arg1: memref<16x128xbf16, #tpu.memory_space<vmem>>, %arg2: memref<1x128xf32, #tpu.memory_space<vmem>>, %arg3: memref<1x128xf32, #tpu.memory_space<vmem>>, %arg4: memref<128x128xbf16, #tpu.memory_space<vmem>>, %arg5: memref<16x128xbf16, #tpu.memory_space<vmem>>, %arg6: memref<8x128xf32, #tpu.memory_space<vmem>>) attributes {dimension_semantics = [#tpu.dimension_semantics<parallel>], iteration_bounds = array<i64: 2>, scalar_prefetch = 0 : i64, scratch_operands = 0 : i64, tpu.core_type = #tpu.core_type<tc>, window_params = [{transform_indices = @transform_0, window_bounds = array<i64: 16, 128>}, {pipeline_mode = #tpu.pipeline_mode<synchronous>, transform_indices = @transform_1, window_bounds = array<i64: 1, 128>}, {pipeline_mode = #tpu.pipeline_mode<synchronous>, transform_indices = @transform_2, window_bounds = array<i64: 1, 128>}, {pipeline_mode = #tpu.pipeline_mode<synchronous>, transform_indices = @transform_3, window_bounds = array<i64: 128, 128>}, {transform_indices = @transform_4, window_bounds = array<i64: 16, 128>}, {transform_indices = @transform_5, window_bounds = array<i64: 8, 128>}]} {
    %c0 = arith.constant 0 : index
    %c0_0 = arith.constant 0 : index
    %0 = vector.load %arg1[%c0, %c0_0] : memref<16x128xbf16, #tpu.memory_space<vmem>>, vector<16x128xbf16>
    %1 = arith.extf %0 : vector<16x128xbf16> to vector<16x128xf32>
    %c0_1 = arith.constant 0 : index
    %c0_2 = arith.constant 0 : index
    %2 = vector.load %arg2[%c0_1, %c0_2] : memref<1x128xf32, #tpu.memory_space<vmem>>, vector<1x128xf32>
    %3 = vector.broadcast %2 : vector<1x128xf32> to vector<16x128xf32>
    %4 = arith.mulf %1, %3 : vector<16x128xf32>
    %c0_3 = arith.constant 0 : index
    %c0_4 = arith.constant 0 : index
    %5 = vector.load %arg3[%c0_3, %c0_4] : memref<1x128xf32, #tpu.memory_space<vmem>>, vector<1x128xf32>
    %6 = vector.broadcast %5 : vector<1x128xf32> to vector<16x128xf32>
    %7 = arith.addf %4, %6 : vector<16x128xf32>
    %cst = arith.constant 0.000000e+00 : f32
    %8 = vector.broadcast %cst : f32 to vector<16x128xf32>
    %9 = arith.maximumf %7, %8 : vector<16x128xf32>
    %10 = tpu.iota {dimensions = array<i32: 0>} : vector<16x128xi32>
    %c16_i32 = arith.constant 16 : i32
    %11 = arith.muli %arg0, %c16_i32 : i32
    %12 = vector.broadcast %11 : i32 to vector<16x128xi32>
    %13 = arith.addi %10, %12 : vector<16x128xi32>
    %c20_i32 = arith.constant 20 : i32
    %14 = vector.broadcast %c20_i32 : i32 to vector<16x128xi32>
    %15 = arith.cmpi slt, %13, %14 : vector<16x128xi32>
    %cst_5 = arith.constant 0.000000e+00 : f32
    %16 = vector.broadcast %cst_5 : f32 to vector<16x128xf32>
    %17 = arith.select %15, %9, %16 : vector<16x128xi1>, vector<16x128xf32>
    %18 = arith.truncf %17 : vector<16x128xf32> to vector<16x128xbf16>
    %c0_6 = arith.constant 0 : index
    %c0_7 = arith.constant 0 : index
    %19 = vector.load %arg4[%c0_6, %c0_7] : memref<128x128xbf16, #tpu.memory_space<vmem>>, vector<128x128xbf16>
    %cst_8 = arith.constant dense<0.000000e+00> : vector<16x128xf32>
    %20 = tpu.matmul %18, %19, %cst_8 {dimension_numbers = #tpu.dot_dimension_numbers<[1], [0], [0], [1], [0, 0, 1, 1], [], []>} : vector<16x128xbf16>, vector<128x128xbf16>, vector<16x128xf32> -> vector<16x128xf32>
    %cst_9 = arith.constant dense<0.000000e+00> : vector<128xf32>
    %21 = vector.multi_reduction <add>, %20, %cst_9 [0] : vector<16x128xf32> to vector<128xf32>
    %22 = vector.shape_cast %21 : vector<128xf32> to vector<1x128xf32>
    %c0_10 = arith.constant 0 : index
    %c0_11 = arith.constant 0 : index
    %23 = vector.load %arg6[%c0_10, %c0_11] : memref<8x128xf32, #tpu.memory_space<vmem>>, vector<1x128xf32>
    tpu.vector_store %arg6[%c0_10, %c0_11], %22 {strides = array<i32>} : memref<8x128xf32, #tpu.memory_space<vmem>>, vector<1x128xf32>,
    %24 = arith.mulf %20, %20 : vector<16x128xf32>
    %cst_12 = arith.constant dense<0.000000e+00> : vector<128xf32>
    %25 = vector.multi_reduction <add>, %24, %cst_12 [0] : vector<16x128xf32> to vector<128xf32>
    %26 = vector.shape_cast %25 : vector<128xf32> to vector<1x128xf32>
    %c1 = arith.constant 1 : index
    %c0_13 = arith.constant 0 : index
    %27 = vector.load %arg6[%c1, %c0_13] : memref<8x128xf32, #tpu.memory_space<vmem>>, vector<1x128xf32>
    tpu.vector_store %arg6[%c1, %c0_13], %26 {strides = array<i32>} : memref<8x128xf32, #tpu.memory_space<vmem>>, vector<1x128xf32>,
    %28 = arith.truncf %20 : vector<16x128xf32> to vector<16x128xbf16>
    %c0_14 = arith.constant 0 : index
    %c0_15 = arith.constant 0 : index
    %29 = vector.load %arg5[%c0_14, %c0_15] : memref<16x128xbf16, #tpu.memory_space<vmem>>, vector<16x128xbf16>
    tpu.vector_store %arg5[%c0_14, %c0_15], %28 {strides = array<i32>} : memref<16x128xbf16, #tpu.memory_space<vmem>>, vector<16x128xbf16>,
    return
  }
  func.func @transform_0(%arg0: i32) -> (i32, i32) {
    %c0_i32 = arith.constant 0 : i32
    %c0_i32_0 = arith.constant 0 : i32
    return %arg0, %c0_i32 : i32, i32
  }
  func.func @transform_1(%arg0: i32) -> (i32, i32) {
    %c0_i32 = arith.constant 0 : i32
    %c0_i32_0 = arith.constant 0 : i32
    %c0_i32_1 = arith.constant 0 : i32
    return %c0_i32, %c0_i32_0 : i32, i32
  }
  func.func @transform_2(%arg0: i32) -> (i32, i32) {
    %c0_i32 = arith.constant 0 : i32
    %c0_i32_0 = arith.constant 0 : i32
    %c0_i32_1 = arith.constant 0 : i32
    return %c0_i32, %c0_i32_0 : i32, i32
  }
  func.func @transform_3(%arg0: i32) -> (i32, i32) {
    %c0_i32 = arith.constant 0 : i32
    %c0_i32_0 = arith.constant 0 : i32
    %c0_i32_1 = arith.constant 0 : i32
    return %c0_i32, %c0_i32_0 : i32, i32
  }
  func.func @transform_4(%arg0: i32) -> (i32, i32) {
    %c0_i32 = arith.constant 0 : i32
    %c0_i32_0 = arith.constant 0 : i32
    return %arg0, %c0_i32 : i32, i32
  }
  func.func @transform_5(%arg0: i32) -> (i32, i32) {
    %c0_i32 = arith.constant 0 : i32
    %c0_i32_0 = arith.constant 0 : i32
    return %arg0, %c0_i32 : i32, i32
  }
}

</mosaic_0001>

<llo_original>
// kernel: dense_encoder_forward.3
$region0: #{dense_encoder_forward.3}
  #allocation0 [shape = 'u32[]', space=smem, size = 0x4, offset = 0x4, fixed_abs, tag = 'smem constant byte address 0x4 - core index']
  #allocation1 [shape = 'u32[144,128]{1,0:T(1,128)}', space=vmem, size = 0x12000, scoped, tag = 'internal scratch']
  %s0 = inlined_call_operand.vmem [shape: bf16[32,32], index: 0, kind: input, shape index: {}]
  %s1 = inlined_call_operand.vmem [shape: bf16[32,128], index: 1, kind: input, shape index: {}]
  %s2 = inlined_call_operand.vmem [shape: bf16[32,128], index: 2, kind: output, shape index: {0}]
  %s3 = inlined_call_operand.vmem [shape: f32[16,128], index: 3, kind: output, shape index: {1}]
  %4 = xla_tuple %s2, %s3
  %s5 = sld [smem:[#allocation0]]
  $region49: #{dense_encoder_forward.3} parent=0
    _
  %s7 = ssub.s32 1, %s5
  %s8 = scalar_select 0, %s7, %s5
  loop: start=0, step=1, limit=4
  $region2: #{dense_encoder_forward.3} parent=0 // loop_pre_header
    _
  $region3: #{dense_encoder_forward.3} parent=0 // loop_header
    %s10 = sphi 0, %s14
    %p11 = scmp.ge.s32.totalorder %s10, 4
    %s20 = sphi 0, %s22
    %s23 = sphi 0, %s20
    %s24 = sphi 0, %s23
    %s40 = sphi 0, %s24
    %s44 = sphi 0, %s44
    %s46 = sphi 0, %s44
    %s47 = sphi 0, %s46
    %s61 = sphi 0, %s47
    %s67 = sphi 0, %s69
    %s70 = sphi 0, %s67
    %s71 = sphi 0, %s70
    %s87 = sphi 0, %s71
    %s93 = sphi 0, %s95
    %s96 = sphi 0, %s93
    %s97 = sphi 0, %s96
    %s113 = sphi 0, %s97
  $region4: #{dense_encoder_forward.3} parent=0 // loop_header_branch
    %13 = sbr.rel (%p11) target = $region8
  $region5: #{dense_encoder_forward.3} parent=0 // loop_body
    %s15 = ssub.s32 %s10, 1
    %s16 = ssub.s32 %s10, 2
    %s17 = sadd.s32 %s10, 1
    %s18 = ssub.s32 %s10, %s17
    %p19 = scmp.eq.s32.totalorder %s18, 0
    %s21 = sadd.s32 %s20, 1
    %s22 = scalar_select %p19, %s20, %s21
    %p25 = pneg %p19
    %p26 = scmp.eq.s32.totalorder %s10, 1
    %p27 = por %p25, %p26
    %p28 = scmp.ne.s32.totalorder %s20, %s23
    %p29 = scmp.eq.s32.totalorder %s10, 0
    %p30 = por %p28, %p29
    %p31 = scmp.ne.s32.totalorder %s20, %s23
    %p32 = scmp.eq.s32.totalorder %s15, 1
    %p33 = por %p31, %p32
    %p34 = scmp.ne.s32.totalorder %s23, %s24
    %p35 = scmp.eq.s32.totalorder %s15, 0
    %p36 = por %p34, %p35
    %p37 = scmp.ne.s32.totalorder %s23, %s24
    %p38 = scmp.eq.s32.totalorder %s16, 1
    %p39 = por %p37, %p38
    %p41 = scmp.ne.s32.totalorder %s24, %s40
    %p42 = scmp.eq.s32.totalorder %s16, 0
    %p43 = por %p41, %p42
    %s45 = sadd.s32 %s44, 1
    %p48 = scmp.eq.s32.totalorder %s10, 1
    %p49 = scmp.ne.s32.totalorder %s44, %s46
    %p50 = scmp.eq.s32.totalorder %s10, 0
    %p51 = por %p49, %p50
    %p52 = scmp.ne.s32.totalorder %s44, %s46
    %p53 = scmp.eq.s32.totalorder %s15, 1
    %p54 = por %p52, %p53
    %p55 = scmp.ne.s32.totalorder %s46, %s47
    %p56 = scmp.eq.s32.totalorder %s15, 0
    %p57 = por %p55, %p56
    %p58 = scmp.ne.s32.totalorder %s46, %s47
    %p59 = scmp.eq.s32.totalorder %s16, 1
    %p60 = por %p58, %p59
    %p62 = scmp.ne.s32.totalorder %s47, %s61
    %p63 = scmp.eq.s32.totalorder %s16, 0
    %p64 = por %p62, %p63
    %s65 = ssub.s32 %s10, %s17
    %p66 = scmp.eq.s32.totalorder %s65, 0
    %s68 = sadd.s32 %s67, 1
    %s69 = scalar_select %p66, %s67, %s68
    %p72 = pneg %p66
    %p73 = scmp.eq.s32.totalorder %s10, 1
    %p74 = por %p72, %p73
    %p75 = scmp.ne.s32.totalorder %s67, %s70
    %p76 = scmp.eq.s32.totalorder %s10, 0
    %p77 = por %p75, %p76
    %p78 = scmp.ne.s32.totalorder %s67, %s70
    %p79 = scmp.eq.s32.totalorder %s15, 1
    %p80 = por %p78, %p79
    %p81 = scmp.ne.s32.totalorder %s70, %s71
    %p82 = scmp.eq.s32.totalorder %s15, 0
    %p83 = por %p81, %p82
    %p84 = scmp.ne.s32.totalorder %s70, %s71
    %p85 = scmp.eq.s32.totalorder %s16, 1
    %p86 = por %p84, %p85
    %p88 = scmp.ne.s32.totalorder %s71, %s87
    %p89 = scmp.eq.s32.totalorder %s16, 0
    %p90 = por %p88, %p89
    %s91 = ssub.s32 %s10, %s17
    %p92 = scmp.eq.s32.totalorder %s91, 0
    %s94 = sadd.s32 %s93, 1
    %s95 = scalar_select %p92, %s93, %s94
    %p98 = pneg %p92
    %p99 = scmp.eq.s32.totalorder %s10, 1
    %p100 = por %p98, %p99
    %p101 = scmp.ne.s32.totalorder %s93, %s96
    %p102 = scmp.eq.s32.totalorder %s10, 0
    %p103 = por %p101, %p102
    %p104 = scmp.ne.s32.totalorder %s93, %s96
    %p105 = scmp.eq.s32.totalorder %s15, 1
    %p106 = por %p104, %p105
    %p107 = scmp.ne.s32.totalorder %s96, %s97
    %p108 = scmp.eq.s32.totalorder %s15, 0
    %p109 = por %p107, %p108
    %p110 = scmp.ne.s32.totalorder %s96, %s97
    %p111 = scmp.eq.s32.totalorder %s16, 1
    %p112 = por %p110, %p111
    %p114 = scmp.ne.s32.totalorder %s97, %s113
    %p115 = scmp.eq.s32.totalorder %s16, 0
    %p116 = por %p114, %p115
    %p117 = scmp.le.s32.totalorder 1, %s10
    %p118 = scmp.lt.s32.totalorder %s10, 3
    %p119 = pnand %p117, %p118
    %p120 = pneg %p119
    // Predicated region
    $region9: #{dense_encoder_forward.3} parent=5 // pred_check
      _
    $region10: #{dense_encoder_forward.3} parent=5 // pred_check_branch
      %122 = sbr.rel (%p119) target = $region12
    $region11: #{dense_encoder_forward.3} parent=5 // pred_region
      %s123 = ssub.s32 %s10, 1
      // Predicated region
      $region13: #{dense_encoder_forward.3} parent=11 // pred_check
        %p124 = pneg %p57
      $region14: #{dense_encoder_forward.3} parent=11 // pred_check_branch
        %126 = sbr.rel (%p124) target = $region16
      $region15: #{dense_encoder_forward.3} parent=11 // pred_region
        _
      $region16: #{dense_encoder_forward.3} parent=11 // pred_fallthru
        _
    $region12: #{dense_encoder_forward.3} parent=5 // pred_fallthru
      _
    %p127 = scmp.lt.s32.totalorder %s10, 2
    // Predicated region
    $region17: #{dense_encoder_forward.3} parent=5 // pred_check
      %p128 = pneg %p127
    $region18: #{dense_encoder_forward.3} parent=5 // pred_check_branch
      %130 = sbr.rel (%p128) target = $region20
    $region19: #{dense_encoder_forward.3} parent=5 // pred_region
      // Predicated region
      $region21: #{dense_encoder_forward.3} parent=19 // pred_check
        %p131 = pneg %p30
      $region22: #{dense_encoder_forward.3} parent=19 // pred_check_branch
        %133 = sbr.rel (%p131) target = $region24
      $region23: #{dense_encoder_forward.3} parent=19 // pred_region
        %s134 = smul.u32 2, %s10
        %p135 = scmp.lt.s32.totalorder %s134, 3
        %s136 = scalar_select %p135, %s134, 3
        %s137 = smul.addr %s136, 4
        %s138 = scalar_lea.vmem %s0, %s137
        %s139 = smul.u32 2, %s10
      $region24: #{dense_encoder_forward.3} parent=19 // pred_fallthru
        _
    $region20: #{dense_encoder_forward.3} parent=5 // pred_fallthru
      _
    %p140 = scmp.le.s32.totalorder 1, %s10
    %p141 = scmp.lt.s32.totalorder %s10, 3
    %p142 = pnand %p140, %p141
    %p143 = pneg %p142
    // Predicated region
    $region25: #{dense_encoder_forward.3} parent=5 // pred_check
      _
    $region26: #{dense_encoder_forward.3} parent=5 // pred_check_branch
      %145 = sbr.rel (%p142) target = $region28
    $region27: #{dense_encoder_forward.3} parent=5 // pred_region
      %s146 = ssub.s32 %s10, 1
      %s147 = smul.u32 2, %s15
      %p148 = scmp.lt.s32.totalorder %s147, 3
      %s149 = scalar_select %p148, %s147, 3
      %s150 = smul.addr %s149, 4
      %s151 = scalar_lea.vmem %s0, %s150
      %p152 = pneg %p36
      %p153 = pneg %p33
      %p154 = pneg %p57
      %p155 = pneg %p54
      %p156 = pneg %p83
      %p157 = pneg %p80
      %s158 = smul.u32 2, %s15
      %p159 = scmp.lt.s32.totalorder %s158, 3
      %s160 = scalar_select %p159, %s158, 3
      %s161 = smul.addr %s160, 4
      %s162 = scalar_lea.vmem %s2, %s161
      %p163 = pneg %p109
      %p164 = pneg %p106
      %p165 = scmp.lt.s32.totalorder %s15, 1
      %s166 = scalar_select %p165, %s15, 1
      %s167 = smul.addr %s166, 8
      %s168 = scalar_lea.vmem %s3, %s167
      %s169 = smul.u32 2, %s15
      %p170 = scmp.lt.s32.totalorder %s169, 3
      %s171 = scalar_select %p170, %s169, 3
      %s172 = smul.addr %s171, 4
      %s173 = scalar_lea.vmem %s0, %s172
      %s174 = smul.u32 2, %s15
      %s175 = smul.u32 2, %s15
      %p176 = scmp.lt.s32.totalorder %s175, 3
      %s177 = scalar_select %p176, %s175, 3
      %s178 = smul.addr %s177, 4
      %s179 = scalar_lea.vmem %s2, %s178
      %s180 = smul.u32 2, %s15
      %p181 = scmp.lt.s32.totalorder %s15, 1
      %s182 = scalar_select %p181, %s15, 1
      %s183 = smul.addr %s182, 8
      %s184 = scalar_lea.vmem %s3, %s183
      %v186 = vld [vmem:[%s173] sm:$0xf]
      %v187 = vld [vmem:[%s173 + $0x4] sm:$0xf]
      %v188 = vld [vmem:[%s1] sm:$0xf]
      %v189 = vld [vmem:[%s1 + $0x4] sm:$0xf]
      %v190 = vld [vmem:[%s1 + $0x8] sm:$0xf]
      %v191 = vld [vmem:[%s1 + $0xc] sm:$0xf]
      %v194 = vunpack.c.l.b16 %v186
      %v195 = vunpack.c.l.b16 %v187
      %v196 = vpack.c.b16 %v195, %v194
      %v201 = vunpack.c.l.b16 %v188
      %v202 = vunpack.c.l.b16 %v189
      %v203 = vunpack.c.l.b16 %v190
      %v204 = vunpack.c.l.b16 %v191
      %v205 = vpack.c.b16 %v202, %v201
      %v206 = vpack.c.b16 %v204, %v203
      %vm209 = vcmask 261120
      %v211 = vsel %vm209, %v196, 0
      %213 = vmatprep.subr.bf16.mxu0 0
      %214 = vmatpush1.bf16.msra.mxu0 %v205
      %215 = vmatprep.subr.bf16.mxu0 0
      %216 = vmatpush1.bf16.msra.mxu0 %v206
      %217 = vmatprep.subr.bf16.mxu0 0
      %218 = vmatpush1.bf16.msra.mxu0 0
      %219 = vmatprep.subr.bf16.mxu0 0
      %220 = vmatpush1.bf16.msra.mxu0 0
      %221 = vmatprep.subr.bf16.mxu0 0
      %222 = vmatpush1.bf16.msra.mxu0 0
      %223 = vmatprep.subr.bf16.mxu0 0
      %224 = vmatpush1.bf16.msra.mxu0 0
      %225 = vmatprep.subr.bf16.mxu0 0
      %226 = vmatpush1.bf16.msra.mxu0 0
      %227 = vmatprep.subr.bf16.mxu0 0
      %228 = vmatpush1.bf16.msra.mxu0 0
      %229 = vmatprep.subr.bf16.mxu0 0
      %230 = vmatpush1.bf16.msra.mxu0 0
      %231 = vmatprep.subr.bf16.mxu0 0
      %232 = vmatpush1.bf16.msra.mxu0 0
      %233 = vmatprep.subr.bf16.mxu0 0
      %234 = vmatpush1.bf16.msra.mxu0 0
      %235 = vmatprep.subr.bf16.mxu0 0
      %236 = vmatpush1.bf16.msra.mxu0 0
      %237 = vmatprep.subr.bf16.mxu0 0
      %238 = vmatpush1.bf16.msra.mxu0 0
      %239 = vmatprep.subr.bf16.mxu0 0
      %240 = vmatpush1.bf16.msra.mxu0 0
      %241 = vmatprep.subr.bf16.mxu0 0
      %242 = vmatpush1.bf16.msra.mxu0 0
      %243 = vmatprep.subr.bf16.mxu0 0
      %244 = vmatpush1.bf16.msra.mxu0 0
      %245 = vmatprep.mubr.bf16.mxu0 0
      %246 = vmatmul.mubr.bf16.gmra.mrb[0].mxu0 %v211
      %v247 = vpop.f32.mrb[0].mxu0
      %v248 = vadd.f32 0.0, %v247
      %v249 = vpop.f32.mrb[0].mxu0
      %v250 = vpop.f32.mrb[0].mxu0
      %v251 = vadd.f32 0.0, %v250
      %v252 = vpop.f32.mrb[0].mxu0
      %253 = vdwg.mxu0
      %v254 = vadd.f32 %v248, %v251
      %v255 = vrot.slane %v254, 4
      %v256 = vadd.f32 %v254, %v255
      %v257 = vrot.slane %v256, 2
      %v258 = vadd.f32 %v256, %v257
      %v259 = vrot.slane %v258, 1
      %v260 = vadd.f32 %v258, %v259
      %261 = vst [vmem:[%s184] sm:$0x1] %v260
      %v262 = vmul.f32 %v248, %v248
      %v263 = vmul.f32 %v251, %v251
      %v264 = vadd.f32 %v262, %v263
      %v265 = vrot.slane %v264, 4
      %v266 = vadd.f32 %v264, %v265
      %v267 = vrot.slane %v266, 2
      %v268 = vadd.f32 %v266, %v267
      %v269 = vrot.slane %v268, 1
      %v270 = vadd.f32 %v268, %v269
      %271 = vst [vmem:[%s184 + $0x1] sm:$0x1] %v270
      %v272 = vpack.c.bf16 %v251, %v248
      %v274 = vunpack.c.l.b16 %v272
      %v275 = vunpack.c.h.b16 %v272
      %v276 = vpack.c.b16 %v274, %v274
      %v277 = vpack.c.b16 %v275, %v275
      %280 = vst [vmem:[%s179] sm:$0xf] %v276
      %281 = vst [vmem:[%s179 + $0x4] sm:$0xf] %v277
      %s282 = smul.u32 2, %s15
      %p283 = scmp.lt.s32.totalorder %s282, 3
      %s284 = scalar_select %p283, %s282, 3
      %s285 = smul.addr %s284, 4
      %s286 = scalar_lea.vmem %s2, %s285
      %p287 = scmp.lt.s32.totalorder %s15, 1
      %s288 = scalar_select %p287, %s15, 1
      %s289 = smul.addr %s288, 8
      %s290 = scalar_lea.vmem %s3, %s289
      // Predicated region
      $region29: #{dense_encoder_forward.3} parent=27 // pred_check
        %p291 = pneg %p80
      $region30: #{dense_encoder_forward.3} parent=27 // pred_check_branch
        %293 = sbr.rel (%p291) target = $region32
      $region31: #{dense_encoder_forward.3} parent=27 // pred_region
        %s294 = smul.u32 2, %s15
      $region32: #{dense_encoder_forward.3} parent=27 // pred_fallthru
        _
      // Predicated region
      $region33: #{dense_encoder_forward.3} parent=27 // pred_check
        %p295 = pneg %p106
      $region34: #{dense_encoder_forward.3} parent=27 // pred_check_branch
        %297 = sbr.rel (%p295) target = $region36
      $region35: #{dense_encoder_forward.3} parent=27 // pred_region
        _
      $region36: #{dense_encoder_forward.3} parent=27 // pred_fallthru
        _
    $region28: #{dense_encoder_forward.3} parent=5 // pred_fallthru
      _
    %p298 = scmp.le.s32.totalorder 2, %s10
    // Predicated region
    $region37: #{dense_encoder_forward.3} parent=5 // pred_check
      %p299 = pneg %p298
    $region38: #{dense_encoder_forward.3} parent=5 // pred_check_branch
      %301 = sbr.rel (%p299) target = $region40
    $region39: #{dense_encoder_forward.3} parent=5 // pred_region
      %s302 = ssub.s32 %s10, 2
      // Predicated region
      $region41: #{dense_encoder_forward.3} parent=39 // pred_check
        %p303 = pneg %p86
      $region42: #{dense_encoder_forward.3} parent=39 // pred_check_branch
        %305 = sbr.rel (%p303) target = $region44
      $region43: #{dense_encoder_forward.3} parent=39 // pred_region
        %s306 = smul.u32 2, %s16
        %p307 = scmp.lt.s32.totalorder %s306, 3
        %s308 = scalar_select %p307, %s306, 3
        %s309 = smul.addr %s308, 4
        %s310 = scalar_lea.vmem %s2, %s309
      $region44: #{dense_encoder_forward.3} parent=39 // pred_fallthru
        _
      // Predicated region
      $region45: #{dense_encoder_forward.3} parent=39 // pred_check
        %p311 = pneg %p112
      $region46: #{dense_encoder_forward.3} parent=39 // pred_check_branch
        %313 = sbr.rel (%p311) target = $region48
      $region47: #{dense_encoder_forward.3} parent=39 // pred_region
        %p314 = scmp.lt.s32.totalorder %s16, 1
        %s315 = scalar_select %p314, %s16, 1
        %s316 = smul.addr %s315, 8
        %s317 = scalar_lea.vmem %s3, %s316
      $region48: #{dense_encoder_forward.3} parent=39 // pred_fallthru
        _
    $region40: #{dense_encoder_forward.3} parent=5 // pred_fallthru
      _
  $region6: #{dense_encoder_forward.3} parent=0 // loop_footer
    %s14 = sadd.s32 1, %s10
  $region7: #{dense_encoder_forward.3} parent=0 // loop_footer_branch
    %9 = sbr.rel target = $region3
  $region8: #{dense_encoder_forward.3} parent=0 // loop_exit
    _

// kernel: dense_encoder_forward.5
$region0: #{dense_encoder_forward.5}
  #allocation0 [shape = 'u32[]', space=smem, size = 0x4, offset = 0x4, fixed_abs, tag = 'smem constant byte address 0x4 - core index']
  #allocation1 [shape = 'u32[144,128]{1,0:T(1,128)}', space=vmem, size = 0x12000, scoped, tag = 'internal scratch']
  %s0 = inlined_call_operand.vmem [shape: bf16[32,128], index: 0, kind: input, shape index: {}]
  %s1 = inlined_call_operand.vmem [shape: f32[1,128], index: 1, kind: input, shape index: {}]
  %s2 = inlined_call_operand.vmem [shape: f32[1,128], index: 2, kind: input, shape index: {}]
  %s3 = inlined_call_operand.vmem [shape: bf16[128,256], index: 3, kind: input, shape index: {}]
  %s4 = inlined_call_operand.vmem [shape: f32[1,256], index: 4, kind: input, shape index: {}]
  %s5 = inlined_call_operand.vmem [shape: f32[32,256], index: 5, kind: output, shape index: {}]
  %s6 = sld [smem:[#allocation0]]
  $region53: #{dense_encoder_forward.5} parent=0
    _
  %s8 = ssub.s32 1, %s6
  %s9 = scalar_select 0, %s8, %s6
  loop: start=0, step=1, limit=4
  $region2: #{dense_encoder_forward.5} parent=0 // loop_pre_header
    _
  $region3: #{dense_encoder_forward.5} parent=0 // loop_header
    %s11 = sphi 0, %s15
    %p12 = scmp.ge.s32.totalorder %s11, 4
    %s21 = sphi 0, %s23
    %s24 = sphi 0, %s21
    %s25 = sphi 0, %s24
    %s41 = sphi 0, %s25
    %s45 = sphi 0, %s45
    %s47 = sphi 0, %s45
    %s48 = sphi 0, %s47
    %s62 = sphi 0, %s48
    %s66 = sphi 0, %s66
    %s68 = sphi 0, %s66
    %s69 = sphi 0, %s68
    %s83 = sphi 0, %s69
    %s87 = sphi 0, %s87
    %s89 = sphi 0, %s87
    %s90 = sphi 0, %s89
    %s104 = sphi 0, %s90
    %s108 = sphi 0, %s108
    %s110 = sphi 0, %s108
    %s111 = sphi 0, %s110
    %s125 = sphi 0, %s111
    %s131 = sphi 0, %s133
    %s134 = sphi 0, %s131
    %s135 = sphi 0, %s134
    %s151 = sphi 0, %s135
  $region4: #{dense_encoder_forward.5} parent=0 // loop_header_branch
    %14 = sbr.rel (%p12) target = $region8
  $region5: #{dense_encoder_forward.5} parent=0 // loop_body
    %s16 = ssub.s32 %s11, 1
    %s17 = ssub.s32 %s11, 2
    %s18 = sadd.s32 %s11, 1
    %s19 = ssub.s32 %s11, %s18
    %p20 = scmp.eq.s32.totalorder %s19, 0
    %s22 = sadd.s32 %s21, 1
    %s23 = scalar_select %p20, %s21, %s22
    %p26 = pneg %p20
    %p27 = scmp.eq.s32.totalorder %s11, 1
    %p28 = por %p26, %p27
    %p29 = scmp.ne.s32.totalorder %s21, %s24
    %p30 = scmp.eq.s32.totalorder %s11, 0
    %p31 = por %p29, %p30
    %p32 = scmp.ne.s32.totalorder %s21, %s24
    %p33 = scmp.eq.s32.totalorder %s16, 1
    %p34 = por %p32, %p33
    %p35 = scmp.ne.s32.totalorder %s24, %s25
    %p36 = scmp.eq.s32.totalorder %s16, 0
    %p37 = por %p35, %p36
    %p38 = scmp.ne.s32.totalorder %s24, %s25
    %p39 = scmp.eq.s32.totalorder %s17, 1
    %p40 = por %p38, %p39
    %p42 = scmp.ne.s32.totalorder %s25, %s41
    %p43 = scmp.eq.s32.totalorder %s17, 0
    %p44 = por %p42, %p43
    %s46 = sadd.s32 %s45, 1
    %p49 = scmp.eq.s32.totalorder %s11, 1
    %p50 = scmp.ne.s32.totalorder %s45, %s47
    %p51 = scmp.eq.s32.totalorder %s11, 0
    %p52 = por %p50, %p51
    %p53 = scmp.ne.s32.totalorder %s45, %s47
    %p54 = scmp.eq.s32.totalorder %s16, 1
    %p55 = por %p53, %p54
    %p56 = scmp.ne.s32.totalorder %s47, %s48
    %p57 = scmp.eq.s32.totalorder %s16, 0
    %p58 = por %p56, %p57
    %p59 = scmp.ne.s32.totalorder %s47, %s48
    %p60 = scmp.eq.s32.totalorder %s17, 1
    %p61 = por %p59, %p60
    %p63 = scmp.ne.s32.totalorder %s48, %s62
    %p64 = scmp.eq.s32.totalorder %s17, 0
    %p65 = por %p63, %p64
    %s67 = sadd.s32 %s66, 1
    %p70 = scmp.eq.s32.totalorder %s11, 1
    %p71 = scmp.ne.s32.totalorder %s66, %s68
    %p72 = scmp.eq.s32.totalorder %s11, 0
    %p73 = por %p71, %p72
    %p74 = scmp.ne.s32.totalorder %s66, %s68
    %p75 = scmp.eq.s32.totalorder %s16, 1
    %p76 = por %p74, %p75
    %p77 = scmp.ne.s32.totalorder %s68, %s69
    %p78 = scmp.eq.s32.totalorder %s16, 0
    %p79 = por %p77, %p78
    %p80 = scmp.ne.s32.totalorder %s68, %s69
    %p81 = scmp.eq.s32.totalorder %s17, 1
    %p82 = por %p80, %p81
    %p84 = scmp.ne.s32.totalorder %s69, %s83
    %p85 = scmp.eq.s32.totalorder %s17, 0
    %p86 = por %p84, %p85
    %s88 = sadd.s32 %s87, 1
    %p91 = scmp.eq.s32.totalorder %s11, 1
    %p92 = scmp.ne.s32.totalorder %s87, %s89
    %p93 = scmp.eq.s32.totalorder %s11, 0
    %p94 = por %p92, %p93
    %p95 = scmp.ne.s32.totalorder %s87, %s89
    %p96 = scmp.eq.s32.totalorder %s16, 1
    %p97 = por %p95, %p96
    %p98 = scmp.ne.s32.totalorder %s89, %s90
    %p99 = scmp.eq.s32.totalorder %s16, 0
    %p100 = por %p98, %p99
    %p101 = scmp.ne.s32.totalorder %s89, %s90
    %p102 = scmp.eq.s32.totalorder %s17, 1
    %p103 = por %p101, %p102
    %p105 = scmp.ne.s32.totalorder %s90, %s104
    %p106 = scmp.eq.s32.totalorder %s17, 0
    %p107 = por %p105, %p106
    %s109 = sadd.s32 %s108, 1
    %p112 = scmp.eq.s32.totalorder %s11, 1
    %p113 = scmp.ne.s32.totalorder %s108, %s110
    %p114 = scmp.eq.s32.totalorder %s11, 0
    %p115 = por %p113, %p114
    %p116 = scmp.ne.s32.totalorder %s108, %s110
    %p117 = scmp.eq.s32.totalorder %s16, 1
    %p118 = por %p116, %p117
    %p119 = scmp.ne.s32.totalorder %s110, %s111
    %p120 = scmp.eq.s32.totalorder %s16, 0
    %p121 = por %p119, %p120
    %p122 = scmp.ne.s32.totalorder %s110, %s111
    %p123 = scmp.eq.s32.totalorder %s17, 1
    %p124 = por %p122, %p123
    %p126 = scmp.ne.s32.totalorder %s111, %s125
    %p127 = scmp.eq.s32.totalorder %s17, 0
    %p128 = por %p126, %p127
    %s129 = ssub.s32 %s11, %s18
    %p130 = scmp.eq.s32.totalorder %s129, 0
    %s132 = sadd.s32 %s131, 1
    %s133 = scalar_select %p130, %s131, %s132
    %p136 = pneg %p130
    %p137 = scmp.eq.s32.totalorder %s11, 1
    %p138 = por %p136, %p137
    %p139 = scmp.ne.s32.totalorder %s131, %s134
    %p140 = scmp.eq.s32.totalorder %s11, 0
    %p141 = por %p139, %p140
    %p142 = scmp.ne.s32.totalorder %s131, %s134
    %p143 = scmp.eq.s32.totalorder %s16, 1
    %p144 = por %p142, %p143
    %p145 = scmp.ne.s32.totalorder %s134, %s135
    %p146 = scmp.eq.s32.totalorder %s16, 0
    %p147 = por %p145, %p146
    %p148 = scmp.ne.s32.totalorder %s134, %s135
    %p149 = scmp.eq.s32.totalorder %s17, 1
    %p150 = por %p148, %p149
    %p152 = scmp.ne.s32.totalorder %s135, %s151
    %p153 = scmp.eq.s32.totalorder %s17, 0
    %p154 = por %p152, %p153
    %p155 = scmp.le.s32.totalorder 1, %s11
    %p156 = scmp.lt.s32.totalorder %s11, 3
    %p157 = pnand %p155, %p156
    %p158 = pneg %p157
    // Predicated region
    $region9: #{dense_encoder_forward.5} parent=5 // pred_check
      _
    $region10: #{dense_encoder_forward.5} parent=5 // pred_check_branch
      %160 = sbr.rel (%p157) target = $region12
    $region11: #{dense_encoder_forward.5} parent=5 // pred_region
      %s161 = ssub.s32 %s11, 1
      // Predicated region
      $region13: #{dense_encoder_forward.5} parent=11 // pred_check
        %p162 = pneg %p58
      $region14: #{dense_encoder_forward.5} parent=11 // pred_check_branch
        %164 = sbr.rel (%p162) target = $region16
      $region15: #{dense_encoder_forward.5} parent=11 // pred_region
        _
      $region16: #{dense_encoder_forward.5} parent=11 // pred_fallthru
        _
      // Predicated region
      $region17: #{dense_encoder_forward.5} parent=11 // pred_check
        %p165 = pneg %p79
      $region18: #{dense_encoder_forward.5} parent=11 // pred_check_branch
        %167 = sbr.rel (%p165) target = $region20
      $region19: #{dense_encoder_forward.5} parent=11 // pred_region
        _
      $region20: #{dense_encoder_forward.5} parent=11 // pred_fallthru
        _
      // Predicated region
      $region21: #{dense_encoder_forward.5} parent=11 // pred_check
        %p168 = pneg %p100
      $region22: #{dense_encoder_forward.5} parent=11 // pred_check_branch
        %170 = sbr.rel (%p168) target = $region24
      $region23: #{dense_encoder_forward.5} parent=11 // pred_region
        _
      $region24: #{dense_encoder_forward.5} parent=11 // pred_fallthru
        _
      // Predicated region
      $region25: #{dense_encoder_forward.5} parent=11 // pred_check
        %p171 = pneg %p121
      $region26: #{dense_encoder_forward.5} parent=11 // pred_check_branch
        %173 = sbr.rel (%p171) target = $region28
      $region27: #{dense_encoder_forward.5} parent=11 // pred_region
        _
      $region28: #{dense_encoder_forward.5} parent=11 // pred_fallthru
        _
    $region12: #{dense_encoder_forward.5} parent=5 // pred_fallthru
      _
    %p174 = scmp.lt.s32.totalorder %s11, 2
    // Predicated region
    $region29: #{dense_encoder_forward.5} parent=5 // pred_check
      %p175 = pneg %p174
    $region30: #{dense_encoder_forward.5} parent=5 // pred_check_branch
      %177 = sbr.rel (%p175) target = $region32
    $region31: #{dense_encoder_forward.5} parent=5 // pred_region
      // Predicated region
      $region33: #{dense_encoder_forward.5} parent=31 // pred_check
        %p178 = pneg %p31
      $region34: #{dense_encoder_forward.5} parent=31 // pred_check_branch
        %180 = sbr.rel (%p178) target = $region36
      $region35: #{dense_encoder_forward.5} parent=31 // pred_region
        %s181 = smul.u32 2, %s11
        %p182 = scmp.lt.s32.totalorder %s181, 3
        %s183 = scalar_select %p182, %s181, 3
        %s184 = smul.addr %s183, 4
        %s185 = scalar_lea.vmem %s0, %s184
        %s186 = smul.u32 2, %s11
      $region36: #{dense_encoder_forward.5} parent=31 // pred_fallthru
        _
    $region32: #{dense_encoder_forward.5} parent=5 // pred_fallthru
      _
    %p187 = scmp.le.s32.totalorder 1, %s11
    %p188 = scmp.lt.s32.totalorder %s11, 3
    %p189 = pnand %p187, %p188
    %p190 = pneg %p189
    // Predicated region
    $region37: #{dense_encoder_forward.5} parent=5 // pred_check
      _
    $region38: #{dense_encoder_forward.5} parent=5 // pred_check_branch
      %192 = sbr.rel (%p189) target = $region40
    $region39: #{dense_encoder_forward.5} parent=5 // pred_region
      %s193 = ssub.s32 %s11, 1
      %s194 = smul.u32 2, %s16
      %p195 = scmp.lt.s32.totalorder %s194, 3
      %s196 = scalar_select %p195, %s194, 3
      %s197 = smul.addr %s196, 4
      %s198 = scalar_lea.vmem %s0, %s197
      %p199 = pneg %p37
      %p200 = pneg %p34
      %p201 = pneg %p58
      %p202 = pneg %p55
      %p203 = pneg %p79
      %p204 = pneg %p76
      %p205 = pneg %p100
      %p206 = pneg %p97
      %p207 = pneg %p121
      %p208 = pneg %p118
      %p209 = pneg %p147
      %p210 = pneg %p144
      %s211 = smul.u32 2, %s16
      %p212 = scmp.lt.s32.totalorder %s211, 3
      %s213 = scalar_select %p212, %s211, 3
      %s214 = smul.addr %s213, 2
      %s215 = smul.addr %s214, 8
      %s216 = scalar_lea.vmem %s5, %s215
      %s217 = smul.u32 2, %s16
      %p218 = scmp.lt.s32.totalorder %s217, 3
      %s219 = scalar_select %p218, %s217, 3
      %s220 = smul.addr %s219, 4
      %s221 = scalar_lea.vmem %s0, %s220
      %s222 = smul.u32 2, %s16
      %s223 = smul.u32 2, %s16
      %p224 = scmp.lt.s32.totalorder %s223, 3
      %s225 = scalar_select %p224, %s223, 3
      %s226 = smul.addr %s225, 2
      %s227 = smul.addr %s226, 8
      %s228 = scalar_lea.vmem %s5, %s227
      %s229 = smul.u32 2, %s16
      %v231 = vld [vmem:[%s221] sm:$0xf]
      %v232 = vld [vmem:[%s221 + $0x4] sm:$0xf]
      %v233 = vunpack.c.l.bf16 %v231
      %v234 = vunpack.c.l.bf16 %v232
      %v235 = vld [vmem:[%s1] sm:$0x1]
      %v237 = vlaneseq
      %v238 = vshrl.u32 %v237, 7
      %v239 = vsub.s32 0, %v238
      %v240 = vrot.slane %v235, %v239
      %v242 = vmul.f32 %v233, %v240
      %v243 = vmul.f32 %v234, %v240
      %v244 = vld [vmem:[%s2] sm:$0x1]
      %v246 = vlaneseq
      %v247 = vshrl.u32 %v246, 7
      %v248 = vsub.s32 0, %v247
      %v249 = vrot.slane %v244, %v248
      %v251 = vadd.f32 %v242, %v249
      %v252 = vadd.f32 %v243, %v249
      %v253 = vmax.f32 %v251, 0.0
      %v254 = vmax.f32 %v252, 0.0
      %v255 = vpack.c.bf16 %v254, %v253
      %v256 = vld [vmem:[%s3] sm:$0xff]
      %v257 = vld [vmem:[%s3 + $0x8] sm:$0xff]
      %v258 = vld [vmem:[%s3 + $0x10] sm:$0xff]
      %v259 = vld [vmem:[%s3 + $0x18] sm:$0xff]
      %v260 = vld [vmem:[%s3 + $0x20] sm:$0xff]
      %v261 = vld [vmem:[%s3 + $0x28] sm:$0xff]
      %v262 = vld [vmem:[%s3 + $0x30] sm:$0xff]
      %v263 = vld [vmem:[%s3 + $0x38] sm:$0xff]
      %v264 = vld [vmem:[%s3 + $0x40] sm:$0xff]
      %v265 = vld [vmem:[%s3 + $0x48] sm:$0xff]
      %v266 = vld [vmem:[%s3 + $0x50] sm:$0xff]
      %v267 = vld [vmem:[%s3 + $0x58] sm:$0xff]
      %v268 = vld [vmem:[%s3 + $0x60] sm:$0xff]
      %v269 = vld [vmem:[%s3 + $0x68] sm:$0xff]
      %v270 = vld [vmem:[%s3 + $0x70] sm:$0xff]
      %v271 = vld [vmem:[%s3 + $0x78] sm:$0xff]
      %v272 = vld [vmem:[%s4] sm:$0x3]
      %v274 = vlaneseq
      %v275 = vshrl.u32 %v274, 7
      %v276 = vsub.s32 0, %v275
      %v277 = vrot.slane %v272, %v276
      %v278 = vlaneseq
      %v279 = vshrl.u32 %v278, 7
      %v280 = vsub.s32 1, %v279
      %v281 = vrot.slane %v272, %v280
      %v300 = vunpack.c.l.b16 %v256
      %v301 = vunpack.c.h.b16 %v256
      %v302 = vunpack.c.l.b16 %v257
      %v303 = vunpack.c.h.b16 %v257
      %v304 = vunpack.c.l.b16 %v258
      %v305 = vunpack.c.h.b16 %v258
      %v306 = vunpack.c.l.b16 %v259
      %v307 = vunpack.c.h.b16 %v259
      %v308 = vunpack.c.l.b16 %v260
      %v309 = vunpack.c.h.b16 %v260
      %v310 = vunpack.c.l.b16 %v261
      %v311 = vunpack.c.h.b16 %v261
      %v312 = vunpack.c.l.b16 %v262
      %v313 = vunpack.c.h.b16 %v262
      %v314 = vunpack.c.l.b16 %v263
      %v315 = vunpack.c.h.b16 %v263
      %v316 = vunpack.c.l.b16 %v264
      %v317 = vunpack.c.h.b16 %v264
      %v318 = vunpack.c.l.b16 %v265
      %v319 = vunpack.c.h.b16 %v265
      %v320 = vunpack.c.l.b16 %v266
      %v321 = vunpack.c.h.b16 %v266
      %v322 = vunpack.c.l.b16 %v267
      %v323 = vunpack.c.h.b16 %v267
      %v324 = vunpack.c.l.b16 %v268
      %v325 = vunpack.c.h.b16 %v268
      %v326 = vunpack.c.l.b16 %v269
      %v327 = vunpack.c.h.b16 %v269
      %v328 = vunpack.c.l.b16 %v270
      %v329 = vunpack.c.h.b16 %v270
      %v330 = vunpack.c.l.b16 %v271
      %v331 = vunpack.c.h.b16 %v271
      %v332 = vpack.c.b16 %v302, %v300
      %v333 = vpack.c.b16 %v303, %v301
      %v334 = vpack.c.b16 %v306, %v304
      %v335 = vpack.c.b16 %v307, %v305
      %v336 = vpack.c.b16 %v310, %v308
      %v337 = vpack.c.b16 %v311, %v309
      %v338 = vpack.c.b16 %v314, %v312
      %v339 = vpack.c.b16 %v315, %v313
      %v340 = vpack.c.b16 %v318, %v316
      %v341 = vpack.c.b16 %v319, %v317
      %v342 = vpack.c.b16 %v322, %v320
      %v343 = vpack.c.b16 %v323, %v321
      %v344 = vpack.c.b16 %v326, %v324
      %v345 = vpack.c.b16 %v327, %v325
      %v346 = vpack.c.b16 %v330, %v328
      %v347 = vpack.c.b16 %v331, %v329
      %364 = vmatprep.subr.bf16.mxu0 %v333
      %365 = vmatpush1.bf16.msra.mxu0 %v332
      %366 = vmatprep.subr.bf16.mxu0 %v335
      %367 = vmatpush1.bf16.msra.mxu0 %v334
      %368 = vmatprep.subr.bf16.mxu0 %v337
      %369 = vmatpush1.bf16.msra.mxu0 %v336
      %370 = vmatprep.subr.bf16.mxu0 %v339
      %371 = vmatpush1.bf16.msra.mxu0 %v338
      %372 = vmatprep.subr.bf16.mxu0 %v341
      %373 = vmatpush1.bf16.msra.mxu0 %v340
      %374 = vmatprep.subr.bf16.mxu0 %v343
      %375 = vmatpush1.bf16.msra.mxu0 %v342
      %376 = vmatprep.subr.bf16.mxu0 %v345
      %377 = vmatpush1.bf16.msra.mxu0 %v344
      %378 = vmatprep.subr.bf16.mxu0 %v347
      %379 = vmatpush1.bf16.msra.mxu0 %v346
      %380 = vmatprep.subr.bf16.mxu0 0
      %381 = vmatpush1.bf16.msra.mxu0 0
      %382 = vmatprep.subr.bf16.mxu0 0
      %383 = vmatpush1.bf16.msra.mxu0 0
      %384 = vmatprep.subr.bf16.mxu0 0
      %385 = vmatpush1.bf16.msra.mxu0 0
      %386 = vmatprep.subr.bf16.mxu0 0
      %387 = vmatpush1.bf16.msra.mxu0 0
      %388 = vmatprep.subr.bf16.mxu0 0
      %389 = vmatpush1.bf16.msra.mxu0 0
      %390 = vmatprep.subr.bf16.mxu0 0
      %391 = vmatpush1.bf16.msra.mxu0 0
      %392 = vmatprep.subr.bf16.mxu0 0
      %393 = vmatpush1.bf16.msra.mxu0 0
      %394 = vmatprep.subr.bf16.mxu0 0
      %395 = vmatpush1.bf16.msra.mxu0 0
      %396 = vmatprep.mubr.bf16.mxu0 0
      %397 = vmatmul.mubr.bf16.gmra.mrb[0].mxu0 %v255
      %v398 = vpop.f32.mrb[0].mxu0
      %v399 = vadd.f32 %v277, %v398
      %v400 = vpop.f32.mrb[0].mxu0
      %v401 = vadd.f32 %v281, %v400
      %v402 = vpop.f32.mrb[0].mxu0
      %v403 = vadd.f32 %v277, %v402
      %v404 = vpop.f32.mrb[0].mxu0
      %v405 = vadd.f32 %v281, %v404
      %406 = vdwg.mxu0
      %v407 = vlaneseq
      %v408 = vand.u32 %v407, 127
      %v409 = vadd.s32 %v408, 128
      %vm410 = vcmp.ge.s32.totalorder %v408, 128
      %vm411 = vcmp.ge.s32.totalorder %v409, 128
      %v412 = vmax.f32 %v399, -15.0
      %v413 = vmax.f32 %v401, -15.0
      %v414 = vmax.f32 %v403, -15.0
      %v415 = vmax.f32 %v405, -15.0
      %v416 = vmin.f32 %v412, 15.0
      %v417 = vmin.f32 %v413, 15.0
      %v418 = vmin.f32 %v414, 15.0
      %v419 = vmin.f32 %v415, 15.0
      %v420 = vmul.f32 %v416, 1.442695
      %v421 = vpow.pop %v420
      %v422 = vmul.f32 %v417, 1.442695
      %v423 = vpow.pop %v422
      %v424 = vmul.f32 %v418, 1.442695
      %v425 = vpow.pop %v424
      %v426 = vmul.f32 %v419, 1.442695
      %v427 = vpow.pop %v426
      %v428 = vsel %vm410, %v421, %v399
      %v429 = vsel %vm411, %v423, %v401
      %v430 = vsel %vm410, %v425, %v403
      %v431 = vsel %vm411, %v427, %v405
      %432 = vst [vmem:[%s228] sm:$0xff] %v428
      %433 = vst [vmem:[%s228 + $0x8] sm:$0xff] %v429
      %434 = vst [vmem:[%s228 + $0x10] sm:$0xff] %v430
      %435 = vst [vmem:[%s228 + $0x18] sm:$0xff] %v431
      %s436 = smul.u32 2, %s16
      %p437 = scmp.lt.s32.totalorder %s436, 3
      %s438 = scalar_select %p437, %s436, 3
      %s439 = smul.addr %s438, 2
      %s440 = smul.addr %s439, 8
      %s441 = scalar_lea.vmem %s5, %s440
      // Predicated region
      $region41: #{dense_encoder_forward.5} parent=39 // pred_check
        %p442 = pneg %p144
      $region42: #{dense_encoder_forward.5} parent=39 // pred_check_branch
        %444 = sbr.rel (%p442) target = $region44
      $region43: #{dense_encoder_forward.5} parent=39 // pred_region
        %s445 = smul.u32 2, %s16
      $region44: #{dense_encoder_forward.5} parent=39 // pred_fallthru
        _
    $region40: #{dense_encoder_forward.5} parent=5 // pred_fallthru
      _
    %p446 = scmp.le.s32.totalorder 2, %s11
    // Predicated region
    $region45: #{dense_encoder_forward.5} parent=5 // pred_check
      %p447 = pneg %p446
    $region46: #{dense_encoder_forward.5} parent=5 // pred_check_branch
      %449 = sbr.rel (%p447) target = $region48
    $region47: #{dense_encoder_forward.5} parent=5 // pred_region
      %s450 = ssub.s32 %s11, 2
      // Predicated region
      $region49: #{dense_encoder_forward.5} parent=47 // pred_check
        %p451 = pneg %p150
      $region50: #{dense_encoder_forward.5} parent=47 // pred_check_branch
        %453 = sbr.rel (%p451) target = $region52
      $region51: #{dense_encoder_forward.5} parent=47 // pred_region
        %s454 = smul.u32 2, %s17
        %p455 = scmp.lt.s32.totalorder %s454, 3
        %s456 = scalar_select %p455, %s454, 3
        %s457 = smul.addr %s456, 2
        %s458 = smul.addr %s457, 8
        %s459 = scalar_lea.vmem %s5, %s458
      $region52: #{dense_encoder_forward.5} parent=47 // pred_fallthru
        _
    $region48: #{dense_encoder_forward.5} parent=5 // pred_fallthru
      _
  $region6: #{dense_encoder_forward.5} parent=0 // loop_footer
    %s15 = sadd.s32 1, %s11
  $region7: #{dense_encoder_forward.5} parent=0 // loop_footer_branch
    %10 = sbr.rel target = $region3
  $region8: #{dense_encoder_forward.5} parent=0 // loop_exit
    _

// kernel: dense_encoder_forward.4
$region0: #{dense_encoder_forward.4}
  #allocation0 [shape = 'u32[]', space=smem, size = 0x4, offset = 0x4, fixed_abs, tag = 'smem constant byte address 0x4 - core index']
  #allocation1 [shape = 'u32[144,128]{1,0:T(1,128)}', space=vmem, size = 0x12000, scoped, tag = 'internal scratch']
  %s0 = inlined_call_operand.vmem [shape: bf16[32,128], index: 0, kind: input, shape index: {}]
  %s1 = inlined_call_operand.vmem [shape: f32[1,128], index: 1, kind: input, shape index: {}]
  %s2 = inlined_call_operand.vmem [shape: f32[1,128], index: 2, kind: input, shape index: {}]
  %s3 = inlined_call_operand.vmem [shape: bf16[128,128], index: 3, kind: input, shape index: {}]
  %s4 = inlined_call_operand.vmem [shape: bf16[32,128], index: 4, kind: output, shape index: {0}]
  %s5 = inlined_call_operand.vmem [shape: f32[16,128], index: 5, kind: output, shape index: {1}]
  %6 = xla_tuple %s4, %s5
  %s7 = sld [smem:[#allocation0]]
  $region57: #{dense_encoder_forward.4} parent=0
    _
  %s9 = ssub.s32 1, %s7
  %s10 = scalar_select 0, %s9, %s7
  loop: start=0, step=1, limit=4
  $region2: #{dense_encoder_forward.4} parent=0 // loop_pre_header
    _
  $region3: #{dense_encoder_forward.4} parent=0 // loop_header
    %s12 = sphi 0, %s16
    %p13 = scmp.ge.s32.totalorder %s12, 4
    %s22 = sphi 0, %s24
    %s25 = sphi 0, %s22
    %s26 = sphi 0, %s25
    %s42 = sphi 0, %s26
    %s46 = sphi 0, %s46
    %s48 = sphi 0, %s46
    %s49 = sphi 0, %s48
    %s63 = sphi 0, %s49
    %s67 = sphi 0, %s67
    %s69 = sphi 0, %s67
    %s70 = sphi 0, %s69
    %s84 = sphi 0, %s70
    %s88 = sphi 0, %s88
    %s90 = sphi 0, %s88
    %s91 = sphi 0, %s90
    %s105 = sphi 0, %s91
    %s111 = sphi 0, %s113
    %s114 = sphi 0, %s111
    %s115 = sphi 0, %s114
    %s131 = sphi 0, %s115
    %s137 = sphi 0, %s139
    %s140 = sphi 0, %s137
    %s141 = sphi 0, %s140
    %s157 = sphi 0, %s141
  $region4: #{dense_encoder_forward.4} parent=0 // loop_header_branch
    %15 = sbr.rel (%p13) target = $region8
  $region5: #{dense_encoder_forward.4} parent=0 // loop_body
    %s17 = ssub.s32 %s12, 1
    %s18 = ssub.s32 %s12, 2
    %s19 = sadd.s32 %s12, 1
    %s20 = ssub.s32 %s12, %s19
    %p21 = scmp.eq.s32.totalorder %s20, 0
    %s23 = sadd.s32 %s22, 1
    %s24 = scalar_select %p21, %s22, %s23
    %p27 = pneg %p21
    %p28 = scmp.eq.s32.totalorder %s12, 1
    %p29 = por %p27, %p28
    %p30 = scmp.ne.s32.totalorder %s22, %s25
    %p31 = scmp.eq.s32.totalorder %s12, 0
    %p32 = por %p30, %p31
    %p33 = scmp.ne.s32.totalorder %s22, %s25
    %p34 = scmp.eq.s32.totalorder %s17, 1
    %p35 = por %p33, %p34
    %p36 = scmp.ne.s32.totalorder %s25, %s26
    %p37 = scmp.eq.s32.totalorder %s17, 0
    %p38 = por %p36, %p37
    %p39 = scmp.ne.s32.totalorder %s25, %s26
    %p40 = scmp.eq.s32.totalorder %s18, 1
    %p41 = por %p39, %p40
    %p43 = scmp.ne.s32.totalorder %s26, %s42
    %p44 = scmp.eq.s32.totalorder %s18, 0
    %p45 = por %p43, %p44
    %s47 = sadd.s32 %s46, 1
    %p50 = scmp.eq.s32.totalorder %s12, 1
    %p51 = scmp.ne.s32.totalorder %s46, %s48
    %p52 = scmp.eq.s32.totalorder %s12, 0
    %p53 = por %p51, %p52
    %p54 = scmp.ne.s32.totalorder %s46, %s48
    %p55 = scmp.eq.s32.totalorder %s17, 1
    %p56 = por %p54, %p55
    %p57 = scmp.ne.s32.totalorder %s48, %s49
    %p58 = scmp.eq.s32.totalorder %s17, 0
    %p59 = por %p57, %p58
    %p60 = scmp.ne.s32.totalorder %s48, %s49
    %p61 = scmp.eq.s32.totalorder %s18, 1
    %p62 = por %p60, %p61
    %p64 = scmp.ne.s32.totalorder %s49, %s63
    %p65 = scmp.eq.s32.totalorder %s18, 0
    %p66 = por %p64, %p65
    %s68 = sadd.s32 %s67, 1
    %p71 = scmp.eq.s32.totalorder %s12, 1
    %p72 = scmp.ne.s32.totalorder %s67, %s69
    %p73 = scmp.eq.s32.totalorder %s12, 0
    %p74 = por %p72, %p73
    %p75 = scmp.ne.s32.totalorder %s67, %s69
    %p76 = scmp.eq.s32.totalorder %s17, 1
    %p77 = por %p75, %p76
    %p78 = scmp.ne.s32.totalorder %s69, %s70
    %p79 = scmp.eq.s32.totalorder %s17, 0
    %p80 = por %p78, %p79
    %p81 = scmp.ne.s32.totalorder %s69, %s70
    %p82 = scmp.eq.s32.totalorder %s18, 1
    %p83 = por %p81, %p82
    %p85 = scmp.ne.s32.totalorder %s70, %s84
    %p86 = scmp.eq.s32.totalorder %s18, 0
    %p87 = por %p85, %p86
    %s89 = sadd.s32 %s88, 1
    %p92 = scmp.eq.s32.totalorder %s12, 1
    %p93 = scmp.ne.s32.totalorder %s88, %s90
    %p94 = scmp.eq.s32.totalorder %s12, 0
    %p95 = por %p93, %p94
    %p96 = scmp.ne.s32.totalorder %s88, %s90
    %p97 = scmp.eq.s32.totalorder %s17, 1
    %p98 = por %p96, %p97
    %p99 = scmp.ne.s32.totalorder %s90, %s91
    %p100 = scmp.eq.s32.totalorder %s17, 0
    %p101 = por %p99, %p100
    %p102 = scmp.ne.s32.totalorder %s90, %s91
    %p103 = scmp.eq.s32.totalorder %s18, 1
    %p104 = por %p102, %p103
    %p106 = scmp.ne.s32.totalorder %s91, %s105
    %p107 = scmp.eq.s32.totalorder %s18, 0
    %p108 = por %p106, %p107
    %s109 = ssub.s32 %s12, %s19
    %p110 = scmp.eq.s32.totalorder %s109, 0
    %s112 = sadd.s32 %s111, 1
    %s113 = scalar_select %p110, %s111, %s112
    %p116 = pneg %p110
    %p117 = scmp.eq.s32.totalorder %s12, 1
    %p118 = por %p116, %p117
    %p119 = scmp.ne.s32.totalorder %s111, %s114
    %p120 = scmp.eq.s32.totalorder %s12, 0
    %p121 = por %p119, %p120
    %p122 = scmp.ne.s32.totalorder %s111, %s114
    %p123 = scmp.eq.s32.totalorder %s17, 1
    %p124 = por %p122, %p123
    %p125 = scmp.ne.s32.totalorder %s114, %s115
    %p126 = scmp.eq.s32.totalorder %s17, 0
    %p127 = por %p125, %p126
    %p128 = scmp.ne.s32.totalorder %s114, %s115
    %p129 = scmp.eq.s32.totalorder %s18, 1
    %p130 = por %p128, %p129
    %p132 = scmp.ne.s32.totalorder %s115, %s131
    %p133 = scmp.eq.s32.totalorder %s18, 0
    %p134 = por %p132, %p133
    %s135 = ssub.s32 %s12, %s19
    %p136 = scmp.eq.s32.totalorder %s135, 0
    %s138 = sadd.s32 %s137, 1
    %s139 = scalar_select %p136, %s137, %s138
    %p142 = pneg %p136
    %p143 = scmp.eq.s32.totalorder %s12, 1
    %p144 = por %p142, %p143
    %p145 = scmp.ne.s32.totalorder %s137, %s140
    %p146 = scmp.eq.s32.totalorder %s12, 0
    %p147 = por %p145, %p146
    %p148 = scmp.ne.s32.totalorder %s137, %s140
    %p149 = scmp.eq.s32.totalorder %s17, 1
    %p150 = por %p148, %p149
    %p151 = scmp.ne.s32.totalorder %s140, %s141
    %p152 = scmp.eq.s32.totalorder %s17, 0
    %p153 = por %p151, %p152
    %p154 = scmp.ne.s32.totalorder %s140, %s141
    %p155 = scmp.eq.s32.totalorder %s18, 1
    %p156 = por %p154, %p155
    %p158 = scmp.ne.s32.totalorder %s141, %s157
    %p159 = scmp.eq.s32.totalorder %s18, 0
    %p160 = por %p158, %p159
    %p161 = scmp.le.s32.totalorder 1, %s12
    %p162 = scmp.lt.s32.totalorder %s12, 3
    %p163 = pnand %p161, %p162
    %p164 = pneg %p163
    // Predicated region
    $region9: #{dense_encoder_forward.4} parent=5 // pred_check
      _
    $region10: #{dense_encoder_forward.4} parent=5 // pred_check_branch
      %166 = sbr.rel (%p163) target = $region12
    $region11: #{dense_encoder_forward.4} parent=5 // pred_region
      %s167 = ssub.s32 %s12, 1
      // Predicated region
      $region13: #{dense_encoder_forward.4} parent=11 // pred_check
        %p168 = pneg %p59
      $region14: #{dense_encoder_forward.4} parent=11 // pred_check_branch
        %170 = sbr.rel (%p168) target = $region16
      $region15: #{dense_encoder_forward.4} parent=11 // pred_region
        _
      $region16: #{dense_encoder_forward.4} parent=11 // pred_fallthru
        _
      // Predicated region
      $region17: #{dense_encoder_forward.4} parent=11 // pred_check
        %p171 = pneg %p80
      $region18: #{dense_encoder_forward.4} parent=11 // pred_check_branch
        %173 = sbr.rel (%p171) target = $region20
      $region19: #{dense_encoder_forward.4} parent=11 // pred_region
        _
      $region20: #{dense_encoder_forward.4} parent=11 // pred_fallthru
        _
      // Predicated region
      $region21: #{dense_encoder_forward.4} parent=11 // pred_check
        %p174 = pneg %p101
      $region22: #{dense_encoder_forward.4} parent=11 // pred_check_branch
        %176 = sbr.rel (%p174) target = $region24
      $region23: #{dense_encoder_forward.4} parent=11 // pred_region
        _
      $region24: #{dense_encoder_forward.4} parent=11 // pred_fallthru
        _
    $region12: #{dense_encoder_forward.4} parent=5 // pred_fallthru
      _
    %p177 = scmp.lt.s32.totalorder %s12, 2
    // Predicated region
    $region25: #{dense_encoder_forward.4} parent=5 // pred_check
      %p178 = pneg %p177
    $region26: #{dense_encoder_forward.4} parent=5 // pred_check_branch
      %180 = sbr.rel (%p178) target = $region28
    $region27: #{dense_encoder_forward.4} parent=5 // pred_region
      // Predicated region
      $region29: #{dense_encoder_forward.4} parent=27 // pred_check
        %p181 = pneg %p32
      $region30: #{dense_encoder_forward.4} parent=27 // pred_check_branch
        %183 = sbr.rel (%p181) target = $region32
      $region31: #{dense_encoder_forward.4} parent=27 // pred_region
        %s184 = smul.u32 2, %s12
        %p185 = scmp.lt.s32.totalorder %s184, 3
        %s186 = scalar_select %p185, %s184, 3
        %s187 = smul.addr %s186, 4
        %s188 = scalar_lea.vmem %s0, %s187
        %s189 = smul.u32 2, %s12
      $region32: #{dense_encoder_forward.4} parent=27 // pred_fallthru
        _
    $region28: #{dense_encoder_forward.4} parent=5 // pred_fallthru
      _
    %p190 = scmp.le.s32.totalorder 1, %s12
    %p191 = scmp.lt.s32.totalorder %s12, 3
    %p192 = pnand %p190, %p191
    %p193 = pneg %p192
    // Predicated region
    $region33: #{dense_encoder_forward.4} parent=5 // pred_check
      _
    $region34: #{dense_encoder_forward.4} parent=5 // pred_check_branch
      %195 = sbr.rel (%p192) target = $region36
    $region35: #{dense_encoder_forward.4} parent=5 // pred_region
      %s196 = ssub.s32 %s12, 1
      %s197 = smul.u32 2, %s17
      %p198 = scmp.lt.s32.totalorder %s197, 3
      %s199 = scalar_select %p198, %s197, 3
      %s200 = smul.addr %s199, 4
      %s201 = scalar_lea.vmem %s0, %s200
      %p202 = pneg %p38
      %p203 = pneg %p35
      %p204 = pneg %p59
      %p205 = pneg %p56
      %p206 = pneg %p80
      %p207 = pneg %p77
      %p208 = pneg %p101
      %p209 = pneg %p98
      %p210 = pneg %p127
      %p211 = pneg %p124
      %s212 = smul.u32 2, %s17
      %p213 = scmp.lt.s32.totalorder %s212, 3
      %s214 = scalar_select %p213, %s212, 3
      %s215 = smul.addr %s214, 4
      %s216 = scalar_lea.vmem %s4, %s215
      %p217 = pneg %p153
      %p218 = pneg %p150
      %p219 = scmp.lt.s32.totalorder %s17, 1
      %s220 = scalar_select %p219, %s17, 1
      %s221 = smul.addr %s220, 8
      %s222 = scalar_lea.vmem %s5, %s221
      %s223 = smul.u32 2, %s17
      %p224 = scmp.lt.s32.totalorder %s223, 3
      %s225 = scalar_select %p224, %s223, 3
      %s226 = smul.addr %s225, 4
      %s227 = scalar_lea.vmem %s0, %s226
      %s228 = smul.u32 2, %s17
      %s229 = smul.u32 2, %s17
      %p230 = scmp.lt.s32.totalorder %s229, 3
      %s231 = scalar_select %p230, %s229, 3
      %s232 = smul.addr %s231, 4
      %s233 = scalar_lea.vmem %s4, %s232
      %s234 = smul.u32 2, %s17
      %p235 = scmp.lt.s32.totalorder %s17, 1
      %s236 = scalar_select %p235, %s17, 1
      %s237 = smul.addr %s236, 8
      %s238 = scalar_lea.vmem %s5, %s237
      %v240 = vld [vmem:[%s227] sm:$0xf]
      %v241 = vld [vmem:[%s227 + $0x4] sm:$0xf]
      %v242 = vunpack.c.l.bf16 %v240
      %v243 = vunpack.c.l.bf16 %v241
      %v244 = vld [vmem:[%s1] sm:$0x1]
      %v246 = vlaneseq
      %v247 = vshrl.u32 %v246, 7
      %v248 = vsub.s32 0, %v247
      %v249 = vrot.slane %v244, %v248
      %v251 = vmul.f32 %v242, %v249
      %v252 = vmul.f32 %v243, %v249
      %v253 = vld [vmem:[%s2] sm:$0x1]
      %v255 = vlaneseq
      %v256 = vshrl.u32 %v255, 7
      %v257 = vsub.s32 0, %v256
      %v258 = vrot.slane %v253, %v257
      %v260 = vadd.f32 %v251, %v258
      %v261 = vadd.f32 %v252, %v258
      %v262 = vmax.f32 %v260, 0.0
      %v263 = vmax.f32 %v261, 0.0
      %v264 = vlaneseq
      %v265 = vshrl.u32 %v264, 7
      %v266 = vadd.s32 %v265, 8
      %s267 = smul.u32 %s17, 16
      %v268 = vstv %s267
      %v269 = vadd.s32 %v265, %v268
      %v270 = vadd.s32 %v266, %v268
      %vm271 = vcmp.lt.s32.totalorder %v269, 20
      %vm272 = vcmp.lt.s32.totalorder %v270, 20
      %v273 = vsel %vm271, %v262, 0.0
      %v274 = vsel %vm272, %v263, 0.0
      %v275 = vpack.c.bf16 %v274, %v273
      %v276 = vld [vmem:[%s3] sm:$0xf]
      %v277 = vld [vmem:[%s3 + $0x4] sm:$0xf]
      %v278 = vld [vmem:[%s3 + $0x8] sm:$0xf]
      %v279 = vld [vmem:[%s3 + $0xc] sm:$0xf]
      %v280 = vld [vmem:[%s3 + $0x10] sm:$0xf]
      %v281 = vld [vmem:[%s3 + $0x14] sm:$0xf]
      %v282 = vld [vmem:[%s3 + $0x18] sm:$0xf]
      %v283 = vld [vmem:[%s3 + $0x1c] sm:$0xf]
      %v284 = vld [vmem:[%s3 + $0x20] sm:$0xf]
      %v285 = vld [vmem:[%s3 + $0x24] sm:$0xf]
      %v286 = vld [vmem:[%s3 + $0x28] sm:$0xf]
      %v287 = vld [vmem:[%s3 + $0x2c] sm:$0xf]
      %v288 = vld [vmem:[%s3 + $0x30] sm:$0xf]
      %v289 = vld [vmem:[%s3 + $0x34] sm:$0xf]
      %v290 = vld [vmem:[%s3 + $0x38] sm:$0xf]
      %v291 = vld [vmem:[%s3 + $0x3c] sm:$0xf]
      %v308 = vunpack.c.l.b16 %v276
      %v309 = vunpack.c.l.b16 %v277
      %v310 = vunpack.c.l.b16 %v278
      %v311 = vunpack.c.l.b16 %v279
      %v312 = vunpack.c.l.b16 %v280
      %v313 = vunpack.c.l.b16 %v281
      %v314 = vunpack.c.l.b16 %v282
      %v315 = vunpack.c.l.b16 %v283
      %v316 = vunpack.c.l.b16 %v284
      %v317 = vunpack.c.l.b16 %v285
      %v318 = vunpack.c.l.b16 %v286
      %v319 = vunpack.c.l.b16 %v287
      %v320 = vunpack.c.l.b16 %v288
      %v321 = vunpack.c.l.b16 %v289
      %v322 = vunpack.c.l.b16 %v290
      %v323 = vunpack.c.l.b16 %v291
      %v324 = vpack.c.b16 %v309, %v308
      %v325 = vpack.c.b16 %v311, %v310
      %v326 = vpack.c.b16 %v313, %v312
      %v327 = vpack.c.b16 %v315, %v314
      %v328 = vpack.c.b16 %v317, %v316
      %v329 = vpack.c.b16 %v319, %v318
      %v330 = vpack.c.b16 %v321, %v320
      %v331 = vpack.c.b16 %v323, %v322
      %340 = vmatprep.subr.bf16.mxu0 0
      %341 = vmatpush1.bf16.msra.mxu0 %v324
      %342 = vmatprep.subr.bf16.mxu0 0
      %343 = vmatpush1.bf16.msra.mxu0 %v325
      %344 = vmatprep.subr.bf16.mxu0 0
      %345 = vmatpush1.bf16.msra.mxu0 %v326
      %346 = vmatprep.subr.bf16.mxu0 0
      %347 = vmatpush1.bf16.msra.mxu0 %v327
      %348 = vmatprep.subr.bf16.mxu0 0
      %349 = vmatpush1.bf16.msra.mxu0 %v328
      %350 = vmatprep.subr.bf16.mxu0 0
      %351 = vmatpush1.bf16.msra.mxu0 %v329
      %352 = vmatprep.subr.bf16.mxu0 0
      %353 = vmatpush1.bf16.msra.mxu0 %v330
      %354 = vmatprep.subr.bf16.mxu0 0
      %355 = vmatpush1.bf16.msra.mxu0 %v331
      %356 = vmatprep.subr.bf16.mxu0 0
      %357 = vmatpush1.bf16.msra.mxu0 0
      %358 = vmatprep.subr.bf16.mxu0 0
      %359 = vmatpush1.bf16.msra.mxu0 0
      %360 = vmatprep.subr.bf16.mxu0 0
      %361 = vmatpush1.bf16.msra.mxu0 0
      %362 = vmatprep.subr.bf16.mxu0 0
      %363 = vmatpush1.bf16.msra.mxu0 0
      %364 = vmatprep.subr.bf16.mxu0 0
      %365 = vmatpush1.bf16.msra.mxu0 0
      %366 = vmatprep.subr.bf16.mxu0 0
      %367 = vmatpush1.bf16.msra.mxu0 0
      %368 = vmatprep.subr.bf16.mxu0 0
      %369 = vmatpush1.bf16.msra.mxu0 0
      %370 = vmatprep.subr.bf16.mxu0 0
      %371 = vmatpush1.bf16.msra.mxu0 0
      %372 = vmatprep.mubr.bf16.mxu0 0
      %373 = vmatmul.mubr.bf16.gmra.mrb[0].mxu0 %v275
      %v374 = vpop.f32.mrb[0].mxu0
      %v375 = vadd.f32 0.0, %v374
      %v376 = vpop.f32.mrb[0].mxu0
      %v377 = vpop.f32.mrb[0].mxu0
      %v378 = vadd.f32 0.0, %v377
      %v379 = vpop.f32.mrb[0].mxu0
      %380 = vdwg.mxu0
      %v381 = vadd.f32 %v375, %v378
      %v382 = vrot.slane %v381, 4
      %v383 = vadd.f32 %v381, %v382
      %v384 = vrot.slane %v383, 2
      %v385 = vadd.f32 %v383, %v384
      %v386 = vrot.slane %v385, 1
      %v387 = vadd.f32 %v385, %v386
      %388 = vst [vmem:[%s238] sm:$0x1] %v387
      %v389 = vmul.f32 %v375, %v375
      %v390 = vmul.f32 %v378, %v378
      %v391 = vadd.f32 %v389, %v390
      %v392 = vrot.slane %v391, 4
      %v393 = vadd.f32 %v391, %v392
      %v394 = vrot.slane %v393, 2
      %v395 = vadd.f32 %v393, %v394
      %v396 = vrot.slane %v395, 1
      %v397 = vadd.f32 %v395, %v396
      %398 = vst [vmem:[%s238 + $0x1] sm:$0x1] %v397
      %v399 = vpack.c.bf16 %v378, %v375
      %v401 = vunpack.c.l.b16 %v399
      %v402 = vunpack.c.h.b16 %v399
      %v403 = vpack.c.b16 %v401, %v401
      %v404 = vpack.c.b16 %v402, %v402
      %407 = vst [vmem:[%s233] sm:$0xf] %v403
      %408 = vst [vmem:[%s233 + $0x4] sm:$0xf] %v404
      %s409 = smul.u32 2, %s17
      %p410 = scmp.lt.s32.totalorder %s409, 3
      %s411 = scalar_select %p410, %s409, 3
      %s412 = smul.addr %s411, 4
      %s413 = scalar_lea.vmem %s4, %s412
      %p414 = scmp.lt.s32.totalorder %s17, 1
      %s415 = scalar_select %p414, %s17, 1
      %s416 = smul.addr %s415, 8
      %s417 = scalar_lea.vmem %s5, %s416
      // Predicated region
      $region37: #{dense_encoder_forward.4} parent=35 // pred_check
        %p418 = pneg %p124
      $region38: #{dense_encoder_forward.4} parent=35 // pred_check_branch
        %420 = sbr.rel (%p418) target = $region40
      $region39: #{dense_encoder_forward.4} parent=35 // pred_region
        %s421 = smul.u32 2, %s17
      $region40: #{dense_encoder_forward.4} parent=35 // pred_fallthru
        _
      // Predicated region
      $region41: #{dense_encoder_forward.4} parent=35 // pred_check
        %p422 = pneg %p150
      $region42: #{dense_encoder_forward.4} parent=35 // pred_check_branch
        %424 = sbr.rel (%p422) target = $region44
      $region43: #{dense_encoder_forward.4} parent=35 // pred_region
        _
      $region44: #{dense_encoder_forward.4} parent=35 // pred_fallthru
        _
    $region36: #{dense_encoder_forward.4} parent=5 // pred_fallthru
      _
    %p425 = scmp.le.s32.totalorder 2, %s12
    // Predicated region
    $region45: #{dense_encoder_forward.4} parent=5 // pred_check
      %p426 = pneg %p425
    $region46: #{dense_encoder_forward.4} parent=5 // pred_check_branch
      %428 = sbr.rel (%p426) target = $region48
    $region47: #{dense_encoder_forward.4} parent=5 // pred_region
      %s429 = ssub.s32 %s12, 2
      // Predicated region
      $region49: #{dense_encoder_forward.4} parent=47 // pred_check
        %p430 = pneg %p130
      $region50: #{dense_encoder_forward.4} parent=47 // pred_check_branch
        %432 = sbr.rel (%p430) target = $region52
      $region51: #{dense_encoder_forward.4} parent=47 // pred_region
        %s433 = smul.u32 2, %s18
        %p434 = scmp.lt.s32.totalorder %s433, 3
        %s435 = scalar_select %p434, %s433, 3
        %s436 = smul.addr %s435, 4
        %s437 = scalar_lea.vmem %s4, %s436
      $region52: #{dense_encoder_forward.4} parent=47 // pred_fallthru
        _
      // Predicated region
      $region53: #{dense_encoder_forward.4} parent=47 // pred_check
        %p438 = pneg %p156
      $region54: #{dense_encoder_forward.4} parent=47 // pred_check_branch
        %440 = sbr.rel (%p438) target = $region56
      $region55: #{dense_encoder_forward.4} parent=47 // pred_region
        %p441 = scmp.lt.s32.totalorder %s18, 1
        %s442 = scalar_select %p441, %s18, 1
        %s443 = smul.addr %s442, 8
        %s444 = scalar_lea.vmem %s5, %s443
      $region56: #{dense_encoder_forward.4} parent=47 // pred_fallthru
        _
    $region48: #{dense_encoder_forward.4} parent=5 // pred_fallthru
      _
  $region6: #{dense_encoder_forward.4} parent=0 // loop_footer
    %s16 = sadd.s32 1, %s12
  $region7: #{dense_encoder_forward.4} parent=0 // loop_footer_branch
    %11 = sbr.rel target = $region3
  $region8: #{dense_encoder_forward.4} parent=0 // loop_exit
    _

</llo_original>
